<compile_context>
chip_gen: v7x
topology: tpu7x:2x2x1
jax: 0.10.0
libtpu: 0.0.40
codegen_flags: <defaults>
</compile_context>

<pallas_src>
import numpy as np
import jax
import jax.numpy as jnp
from jax.experimental import pallas as pl
from jax.experimental.pallas import tpu as pltpu

# --- sizes implied by the module ---------------------------------------------------------
SEQ, BATCH, INPUT = 5, 10, 10          # user_profiles = torch.randn(5, 10, input_size=10)
HIDDEN = 32                            # hidden_size
GCN_OUT = 64                           # gcn_output_size
FFNN_HIDDEN = 16                       # ffnn_hidden_size
NUM_CLUSTERS = 4                       # num_clusters
N_NODES = BATCH                        # GCN runs over the batch of user embeddings
OUT_COLS = 8                           # packed output: col 0 = depth, cols 1..4 = clusters, pad

LANES = 128                            # params blob lane width (one lane tile)

# --- params blob layout (rows; every section start is a multiple of 8) -------------------
R_WI = 0                               # 16 rows : fused GRU input weights  [r|z|n] (10, 96)
R_WH = 16                              # 32 rows : fused GRU hidden weights [r|z|n] (32, 96)
R_B = 48                               #  8 rows : biases (one per row, see pack_params)
R_WG = 56                              # 32 rows : GCN weight (32, 64)
R_HD = 88                              # 128 rows: fused heads [w1 | wc] (64, 20), rest zero
R_W2 = 216                             # 16 rows : FFNN layer-2 weight (16, 1)
P_ROWS = 232


def user_profiling_kernel(x2d_ref, a_norm_ref, params_ref, out_ref):
    f32 = jnp.float32
    H = HIDDEN

    # --- tile-aligned section loads from the single fused parameter blob -----------------
    w_i = params_ref[R_WI:R_WI + INPUT, :]            # (10, 128)  lanes 96: are zero
    w_h = params_ref[R_WH:R_WH + H, :]                # (32, 128)
    bias = params_ref[R_B:R_B + 8, :]                 # (8, 128)   one aligned load
    b_i = bias[0:1, :]
    b_h = bias[1:2, :]
    b_gcn = bias[2:3, :]
    b_hd = bias[3:4, :]
    b_2 = bias[4:5, :]

    # --- GRU: input projection hoisted out of the recurrence (1 dot for all timesteps) ---
    xw = jnp.dot(x2d_ref[...], w_i, preferred_element_type=f32) + b_i   # (SEQ*B, 128)

    h = jnp.zeros((BATCH, H), f32)
    for t in range(SEQ):                               # tiny & static -> fully unrolled
        xp = xw[t * BATCH:(t + 1) * BATCH, :]          # (B, 128)
        hp = jnp.dot(h, w_h, preferred_element_type=f32) + b_h          # (B, 128)
        rz = jax.nn.sigmoid(xp[:, 0:2 * H] + hp[:, 0:2 * H])            # fused r,z gates
        r = rz[:, 0:H]
        z = rz[:, H:2 * H]
        n = jnp.tanh(xp[:, 2 * H:3 * H] + r * hp[:, 2 * H:3 * H])       # b_hn inside r*(...)
        h = (1.0 - z) * n + z * h
    # h == hidden_states[-1] (final hidden state of the single-layer GRU)

    # --- GCNConv: X W, propagate with D^-1/2 (A+I) D^-1/2, add bias ----------------------
    w_gcn = params_ref[R_WG:R_WG + H, :]               # (32, 128)  lanes 64: are zero
    xw_g = jnp.dot(h, w_gcn, preferred_element_type=f32)               # (N, 128)
    emb = jnp.dot(a_norm_ref[...], xw_g, preferred_element_type=f32) + b_gcn  # lanes 64: == 0

    # --- fused heads: one dot over emb covering [ffnn layer-1 | cluster layer] -----------
    w_hd = params_ref[R_HD:R_HD + LANES, :]            # (128, 128) rows/lanes past valid are 0
    hw = jnp.dot(emb, w_hd, preferred_element_type=f32) + b_hd          # (N, 128)
    hid = jnp.maximum(hw[:, 0:FFNN_HIDDEN], 0.0)                        # ReLU branch
    clusters = hw[:, FFNN_HIDDEN:FFNN_HIDDEN + NUM_CLUSTERS]            # cluster head

    w_2 = params_ref[R_W2:R_W2 + FFNN_HIDDEN, :]       # (16, 128)  lane 0 valid
    depth = (jnp.dot(hid, w_2, preferred_element_type=f32) + b_2)[:, 0:1]   # (N, 1)

    # single lane-contiguous writeback: [depth | clusters | pad]
    pad = jnp.zeros((N_NODES, OUT_COLS - 1 - NUM_CLUSTERS), f32)
    out_ref[...] = jnp.concatenate([depth, clusters, pad], axis=-1)


def build_gcn_norm(edge_index, num_nodes):
    """Dense D^-1/2 (A + I) D^-1/2 with M[dst, src] layout (PyG GCNConv default).

    Host-side NumPy; build once for the static graph and reuse across forwards.
    """
    ei = np.asarray(edge_index)
    a = np.zeros((num_nodes, num_nodes), dtype=np.float32)
    a[ei[1], ei[0]] = 1.0                                    # message flows src -> dst
    a[np.arange(num_nodes), np.arange(num_nodes)] = 1.0      # add self loops
    deg = a.sum(axis=1)                                      # in-degree (incl. self loop)
    dinv = 1.0 / np.sqrt(np.maximum(deg, 1e-12))
    return jnp.asarray((dinv[:, None] * a) * dinv[None, :])


def init_raw_params(key):
    """Raw module parameters (same init scheme/shape family as the PyTorch module)."""
    ks = jax.random.split(key, 19)

    def u(k, shape, fan_in):
        bound = 1.0 / np.sqrt(float(fan_in))
        return jax.random.uniform(k, shape, jnp.float32, -bound, bound)

    return {
        # GRU (transposed relative to PyTorch storage: (in, H) / (H, H))
        'w_ir': u(ks[0], (INPUT, HIDDEN), HIDDEN), 'w_iz': u(ks[1], (INPUT, HIDDEN), HIDDEN),
        'w_in': u(ks[2], (INPUT, HIDDEN), HIDDEN),
        'w_hr': u(ks[3], (HIDDEN, HIDDEN), HIDDEN), 'w_hz': u(ks[4], (HIDDEN, HIDDEN), HIDDEN),
        'w_hn': u(ks[5], (HIDDEN, HIDDEN), HIDDEN),
        'b_ir': u(ks[6], (1, HIDDEN), HIDDEN), 'b_iz': u(ks[7], (1, HIDDEN), HIDDEN),
        'b_in': u(ks[8], (1, HIDDEN), HIDDEN),
        'b_hr': u(ks[9], (1, HIDDEN), HIDDEN), 'b_hz': u(ks[10], (1, HIDDEN), HIDDEN),
        'b_hn': u(ks[11], (1, HIDDEN), HIDDEN),
        # GCNConv
        'w_gcn': u(ks[12], (HIDDEN, GCN_OUT), HIDDEN),
        'b_gcn': jnp.zeros((1, GCN_OUT), jnp.float32),
        # FFNN
        'w1': u(ks[13], (GCN_OUT, FFNN_HIDDEN), GCN_OUT), 'b1': u(ks[14], (1, FFNN_HIDDEN), GCN_OUT),
        'w2': u(ks[15], (FFNN_HIDDEN, 1), FFNN_HIDDEN), 'b2': u(ks[16], (1, 1), FFNN_HIDDEN),
        # cluster layer
        'wc': u(ks[17], (GCN_OUT, NUM_CLUSTERS), GCN_OUT), 'bc': u(ks[18], (1, NUM_CLUSTERS), GCN_OUT),
    }


def pack_params(raw):
    """Pack every parameter once into one (P_ROWS, 128) zero-padded, tile-aligned blob."""
    blob = np.zeros((P_ROWS, LANES), np.float32)

    def put(r0, arr):
        a = np.asarray(arr, np.float32)
        blob[r0:r0 + a.shape[0], 0:a.shape[1]] = a

    put(R_WI, np.concatenate([raw['w_ir'], raw['w_iz'], raw['w_in']], axis=1))   # (10, 96)
    put(R_WH, np.concatenate([raw['w_hr'], raw['w_hz'], raw['w_hn']], axis=1))   # (32, 96)
    put(R_B + 0, np.concatenate([raw['b_ir'], raw['b_iz'], raw['b_in']], axis=1))  # (1, 96)
    put(R_B + 1, np.concatenate([raw['b_hr'], raw['b_hz'], raw['b_hn']], axis=1))  # (1, 96)
    put(R_B + 2, raw['b_gcn'])                                                    # (1, 64)
    put(R_B + 3, np.concatenate([raw['b1'], raw['bc']], axis=1))                  # (1, 20)
    put(R_B + 4, raw['b2'])                                                       # (1, 1)
    put(R_WG, raw['w_gcn'])                                                       # (32, 64)
    put(R_HD, np.concatenate([raw['w1'], raw['wc']], axis=1))                     # (64, 20)
    put(R_W2, raw['w2'])                                                          # (16, 1)
    return jnp.asarray(blob)


def user_profiling_forward(user_profiles, interactions, a_norm, params):
    # `interactions` is unused, exactly as in the reference forward().
    del interactions
    x2d = user_profiles.reshape(SEQ * BATCH, INPUT)

    vmem = pl.BlockSpec(memory_space=pltpu.MemorySpace.VMEM)
    out = pl.pallas_call(
        user_profiling_kernel,
        out_shape=jax.ShapeDtypeStruct((N_NODES, OUT_COLS), jnp.float32),
        in_specs=[vmem, vmem, vmem],
        out_specs=vmem,
    )(x2d, a_norm, params)
    max_depth = out[:, 0:1]
    clusters = out[:, 1:1 + NUM_CLUSTERS]
    return max_depth, clusters


def reference_forward(user_profiles, a_norm, p):
    """Plain-JAX reference of the module's forward (for correctness checking)."""
    h = jnp.zeros((BATCH, HIDDEN), jnp.float32)
    for t in range(SEQ):
        xt = user_profiles[t]
        r = jax.nn.sigmoid(xt @ p['w_ir'] + p['b_ir'] + h @ p['w_hr'] + p['b_hr'])
        z = jax.nn.sigmoid(xt @ p['w_iz'] + p['b_iz'] + h @ p['w_hz'] + p['b_hz'])
        n = jnp.tanh(xt @ p['w_in'] + p['b_in'] + r * (h @ p['w_hn'] + p['b_hn']))
        h = (1.0 - z) * n + z * h
    emb = a_norm @ (h @ p['w_gcn']) + p['b_gcn']
    hid = jnp.maximum(emb @ p['w1'] + p['b1'], 0.0)
    depth = hid @ p['w2'] + p['b2']
    clusters = emb @ p['wc'] + p['bc']
    return depth, clusters


if __name__ == "__main__":
    key = jax.random.PRNGKey(0)
    pkey, xkey, ikey = jax.random.split(key, 3)

    raw = init_raw_params(pkey)
    params = pack_params(raw)                                   # one-time host-side packing
    user_profiles = jax.random.normal(xkey, (SEQ, BATCH, INPUT), jnp.float32)
    interactions = jax.random.normal(ikey, (BATCH, BATCH), jnp.float32)   # unused by forward
    edge_index = np.array([[0, 1, 2, 3], [1, 2, 3, 4]], dtype=np.int32)

    # static graph -> build the normalized adjacency once and reuse across calls
    a_norm = build_gcn_norm(edge_index, N_NODES)

    fwd = jax.jit(user_profiling_forward)
    max_depth, clusters = fwd(user_profiles, interactions, a_norm, params)
    jax.block_until_ready((max_depth, clusters))

    # correctness check against a plain-JAX reference of the same forward
    ref_depth, ref_clusters = reference_forward(user_profiles, a_norm, raw)
    np.testing.assert_allclose(np.asarray(max_depth), np.asarray(ref_depth), rtol=5e-3, atol=5e-3)
    np.testing.assert_allclose(np.asarray(clusters), np.asarray(ref_clusters), rtol=5e-3, atol=5e-3)

    assert max_depth.shape == (BATCH, 1)
    assert clusters.shape == (BATCH, NUM_CLUSTERS)
    print("KERNEL_OK")
</pallas_src>

<mosaic_0001>
module attributes {stable_mosaic.version = 11 : i64} {
  func.func @user_profiling_kernel(%arg0: memref<50x10xf32, #tpu.memory_space<vmem>>, %arg1: memref<10x10xf32, #tpu.memory_space<vmem>>, %arg2: memref<232x128xf32, #tpu.memory_space<vmem>>, %arg3: memref<10x8xf32, #tpu.memory_space<vmem>>) attributes {dimension_semantics = [], scalar_prefetch = 0 : i64, scratch_operands = 0 : i64, tpu.core_type = #tpu.core_type<tc>} {
    %c0 = arith.constant 0 : index
    %c0_0 = arith.constant 0 : index
    %0 = vector.load %arg2[%c0, %c0_0] : memref<232x128xf32, #tpu.memory_space<vmem>>, vector<10x128xf32>
    %c16 = arith.constant 16 : index
    %c0_1 = arith.constant 0 : index
    %1 = vector.load %arg2[%c16, %c0_1] : memref<232x128xf32, #tpu.memory_space<vmem>>, vector<32x128xf32>
    %c48 = arith.constant 48 : index
    %c0_2 = arith.constant 0 : index
    %2 = vector.load %arg2[%c48, %c0_2] : memref<232x128xf32, #tpu.memory_space<vmem>>, vector<8x128xf32>
    %3 = vector.extract_strided_slice %2 {offsets = [0, 0], sizes = [1, 128], strides = [1, 1]} : vector<8x128xf32> to vector<1x128xf32>
    %4 = vector.extract_strided_slice %2 {offsets = [1, 0], sizes = [1, 128], strides = [1, 1]} : vector<8x128xf32> to vector<1x128xf32>
    %5 = vector.extract_strided_slice %2 {offsets = [2, 0], sizes = [1, 128], strides = [1, 1]} : vector<8x128xf32> to vector<1x128xf32>
    %6 = vector.extract_strided_slice %2 {offsets = [3, 0], sizes = [1, 128], strides = [1, 1]} : vector<8x128xf32> to vector<1x128xf32>
    %7 = vector.extract_strided_slice %2 {offsets = [4, 0], sizes = [1, 128], strides = [1, 1]} : vector<8x128xf32> to vector<1x128xf32>
    %c0_3 = arith.constant 0 : index
    %c0_4 = arith.constant 0 : index
    %8 = vector.load %arg0[%c0_3, %c0_4] : memref<50x10xf32, #tpu.memory_space<vmem>>, vector<50x10xf32>
    %cst = arith.constant dense<0.000000e+00> : vector<50x128xf32>
    %9 = tpu.matmul %8, %0, %cst {dimension_numbers = #tpu.dot_dimension_numbers<[1], [0], [0], [1], [0, 0, 1, 1], [], []>} : vector<50x10xf32>, vector<10x128xf32>, vector<50x128xf32> -> vector<50x128xf32>
    %10 = vector.broadcast %3 : vector<1x128xf32> to vector<50x128xf32>
    %11 = arith.addf %9, %10 : vector<50x128xf32>
    %cst_5 = arith.constant 0.000000e+00 : f32
    %12 = vector.broadcast %cst_5 : f32 to vector<10x32xf32>
    %13 = vector.extract_strided_slice %11 {offsets = [0, 0], sizes = [10, 128], strides = [1, 1]} : vector<50x128xf32> to vector<10x128xf32>
    %cst_6 = arith.constant dense<0.000000e+00> : vector<10x128xf32>
    %14 = tpu.matmul %12, %1, %cst_6 {dimension_numbers = #tpu.dot_dimension_numbers<[1], [0], [0], [1], [0, 0, 1, 1], [], []>} : vector<10x32xf32>, vector<32x128xf32>, vector<10x128xf32> -> vector<10x128xf32>
    %15 = vector.broadcast %4 : vector<1x128xf32> to vector<10x128xf32>
    %16 = arith.addf %14, %15 : vector<10x128xf32>
    %17 = vector.extract_strided_slice %13 {offsets = [0, 0], sizes = [10, 64], strides = [1, 1]} : vector<10x128xf32> to vector<10x64xf32>
    %18 = vector.extract_strided_slice %16 {offsets = [0, 0], sizes = [10, 64], strides = [1, 1]} : vector<10x128xf32> to vector<10x64xf32>
    %19 = arith.addf %17, %18 : vector<10x64xf32>
    %20 = arith.negf %19 : vector<10x64xf32>
    %21 = math.exp %20 : vector<10x64xf32>
    %cst_7 = arith.constant 1.000000e+00 : f32
    %22 = vector.broadcast %cst_7 : f32 to vector<10x64xf32>
    %23 = arith.addf %22, %21 : vector<10x64xf32>
    %24 = arith.divf %22, %23 : vector<10x64xf32>
    %25 = vector.extract_strided_slice %24 {offsets = [0, 0], sizes = [10, 32], strides = [1, 1]} : vector<10x64xf32> to vector<10x32xf32>
    %26 = vector.extract_strided_slice %24 {offsets = [0, 32], sizes = [10, 32], strides = [1, 1]} : vector<10x64xf32> to vector<10x32xf32>
    %27 = vector.extract_strided_slice %13 {offsets = [0, 64], sizes = [10, 32], strides = [1, 1]} : vector<10x128xf32> to vector<10x32xf32>
    %28 = vector.extract_strided_slice %16 {offsets = [0, 64], sizes = [10, 32], strides = [1, 1]} : vector<10x128xf32> to vector<10x32xf32>
    %29 = arith.mulf %25, %28 : vector<10x32xf32>
    %30 = arith.addf %27, %29 : vector<10x32xf32>
    %31 = math.tanh %30 : vector<10x32xf32>
    %cst_8 = arith.constant 1.000000e+00 : f32
    %32 = vector.broadcast %cst_8 : f32 to vector<10x32xf32>
    %33 = arith.subf %32, %26 : vector<10x32xf32>
    %34 = arith.mulf %33, %31 : vector<10x32xf32>
    %35 = arith.mulf %26, %12 : vector<10x32xf32>
    %36 = arith.addf %34, %35 : vector<10x32xf32>
    %37 = vector.extract_strided_slice %11 {offsets = [10, 0], sizes = [10, 128], strides = [1, 1]} : vector<50x128xf32> to vector<10x128xf32>
    %cst_9 = arith.constant dense<0.000000e+00> : vector<10x128xf32>
    %38 = tpu.matmul %36, %1, %cst_9 {dimension_numbers = #tpu.dot_dimension_numbers<[1], [0], [0], [1], [0, 0, 1, 1], [], []>} : vector<10x32xf32>, vector<32x128xf32>, vector<10x128xf32> -> vector<10x128xf32>
    %39 = vector.broadcast %4 : vector<1x128xf32> to vector<10x128xf32>
    %40 = arith.addf %38, %39 : vector<10x128xf32>
    %41 = vector.extract_strided_slice %37 {offsets = [0, 0], sizes = [10, 64], strides = [1, 1]} : vector<10x128xf32> to vector<10x64xf32>
    %42 = vector.extract_strided_slice %40 {offsets = [0, 0], sizes = [10, 64], strides = [1, 1]} : vector<10x128xf32> to vector<10x64xf32>
    %43 = arith.addf %41, %42 : vector<10x64xf32>
    %44 = arith.negf %43 : vector<10x64xf32>
    %45 = math.exp %44 : vector<10x64xf32>
    %cst_10 = arith.constant 1.000000e+00 : f32
    %46 = vector.broadcast %cst_10 : f32 to vector<10x64xf32>
    %47 = arith.addf %46, %45 : vector<10x64xf32>
    %48 = arith.divf %46, %47 : vector<10x64xf32>
    %49 = vector.extract_strided_slice %48 {offsets = [0, 0], sizes = [10, 32], strides = [1, 1]} : vector<10x64xf32> to vector<10x32xf32>
    %50 = vector.extract_strided_slice %48 {offsets = [0, 32], sizes = [10, 32], strides = [1, 1]} : vector<10x64xf32> to vector<10x32xf32>
    %51 = vector.extract_strided_slice %37 {offsets = [0, 64], sizes = [10, 32], strides = [1, 1]} : vector<10x128xf32> to vector<10x32xf32>
    %52 = vector.extract_strided_slice %40 {offsets = [0, 64], sizes = [10, 32], strides = [1, 1]} : vector<10x128xf32> to vector<10x32xf32>
    %53 = arith.mulf %49, %52 : vector<10x32xf32>
    %54 = arith.addf %51, %53 : vector<10x32xf32>
    %55 = math.tanh %54 : vector<10x32xf32>
    %cst_11 = arith.constant 1.000000e+00 : f32
    %56 = vector.broadcast %cst_11 : f32 to vector<10x32xf32>
    %57 = arith.subf %56, %50 : vector<10x32xf32>
    %58 = arith.mulf %57, %55 : vector<10x32xf32>
    %59 = arith.mulf %50, %36 : vector<10x32xf32>
    %60 = arith.addf %58, %59 : vector<10x32xf32>
    %61 = vector.extract_strided_slice %11 {offsets = [20, 0], sizes = [10, 128], strides = [1, 1]} : vector<50x128xf32> to vector<10x128xf32>
    %cst_12 = arith.constant dense<0.000000e+00> : vector<10x128xf32>
    %62 = tpu.matmul %60, %1, %cst_12 {dimension_numbers = #tpu.dot_dimension_numbers<[1], [0], [0], [1], [0, 0, 1, 1], [], []>} : vector<10x32xf32>, vector<32x128xf32>, vector<10x128xf32> -> vector<10x128xf32>
    %63 = vector.broadcast %4 : vector<1x128xf32> to vector<10x128xf32>
    %64 = arith.addf %62, %63 : vector<10x128xf32>
    %65 = vector.extract_strided_slice %61 {offsets = [0, 0], sizes = [10, 64], strides = [1, 1]} : vector<10x128xf32> to vector<10x64xf32>
    %66 = vector.extract_strided_slice %64 {offsets = [0, 0], sizes = [10, 64], strides = [1, 1]} : vector<10x128xf32> to vector<10x64xf32>
    %67 = arith.addf %65, %66 : vector<10x64xf32>
    %68 = arith.negf %67 : vector<10x64xf32>
    %69 = math.exp %68 : vector<10x64xf32>
    %cst_13 = arith.constant 1.000000e+00 : f32
    %70 = vector.broadcast %cst_13 : f32 to vector<10x64xf32>
    %71 = arith.addf %70, %69 : vector<10x64xf32>
    %72 = arith.divf %70, %71 : vector<10x64xf32>
    %73 = vector.extract_strided_slice %72 {offsets = [0, 0], sizes = [10, 32], strides = [1, 1]} : vector<10x64xf32> to vector<10x32xf32>
    %74 = vector.extract_strided_slice %72 {offsets = [0, 32], sizes = [10, 32], strides = [1, 1]} : vector<10x64xf32> to vector<10x32xf32>
    %75 = vector.extract_strided_slice %61 {offsets = [0, 64], sizes = [10, 32], strides = [1, 1]} : vector<10x128xf32> to vector<10x32xf32>
    %76 = vector.extract_strided_slice %64 {offsets = [0, 64], sizes = [10, 32], strides = [1, 1]} : vector<10x128xf32> to vector<10x32xf32>
    %77 = arith.mulf %73, %76 : vector<10x32xf32>
    %78 = arith.addf %75, %77 : vector<10x32xf32>
    %79 = math.tanh %78 : vector<10x32xf32>
    %cst_14 = arith.constant 1.000000e+00 : f32
    %80 = vector.broadcast %cst_14 : f32 to vector<10x32xf32>
    %81 = arith.subf %80, %74 : vector<10x32xf32>
    %82 = arith.mulf %81, %79 : vector<10x32xf32>
    %83 = arith.mulf %74, %60 : vector<10x32xf32>
    %84 = arith.addf %82, %83 : vector<10x32xf32>
    %85 = vector.extract_strided_slice %11 {offsets = [30, 0], sizes = [10, 128], strides = [1, 1]} : vector<50x128xf32> to vector<10x128xf32>
    %cst_15 = arith.constant dense<0.000000e+00> : vector<10x128xf32>
    %86 = tpu.matmul %84, %1, %cst_15 {dimension_numbers = #tpu.dot_dimension_numbers<[1], [0], [0], [1], [0, 0, 1, 1], [], []>} : vector<10x32xf32>, vector<32x128xf32>, vector<10x128xf32> -> vector<10x128xf32>
    %87 = vector.broadcast %4 : vector<1x128xf32> to vector<10x128xf32>
    %88 = arith.addf %86, %87 : vector<10x128xf32>
    %89 = vector.extract_strided_slice %85 {offsets = [0, 0], sizes = [10, 64], strides = [1, 1]} : vector<10x128xf32> to vector<10x64xf32>
    %90 = vector.extract_strided_slice %88 {offsets = [0, 0], sizes = [10, 64], strides = [1, 1]} : vector<10x128xf32> to vector<10x64xf32>
    %91 = arith.addf %89, %90 : vector<10x64xf32>
    %92 = arith.negf %91 : vector<10x64xf32>
    %93 = math.exp %92 : vector<10x64xf32>
    %cst_16 = arith.constant 1.000000e+00 : f32
    %94 = vector.broadcast %cst_16 : f32 to vector<10x64xf32>
    %95 = arith.addf %94, %93 : vector<10x64xf32>
    %96 = arith.divf %94, %95 : vector<10x64xf32>
    %97 = vector.extract_strided_slice %96 {offsets = [0, 0], sizes = [10, 32], strides = [1, 1]} : vector<10x64xf32> to vector<10x32xf32>
    %98 = vector.extract_strided_slice %96 {offsets = [0, 32], sizes = [10, 32], strides = [1, 1]} : vector<10x64xf32> to vector<10x32xf32>
    %99 = vector.extract_strided_slice %85 {offsets = [0, 64], sizes = [10, 32], strides = [1, 1]} : vector<10x128xf32> to vector<10x32xf32>
    %100 = vector.extract_strided_slice %88 {offsets = [0, 64], sizes = [10, 32], strides = [1, 1]} : vector<10x128xf32> to vector<10x32xf32>
    %101 = arith.mulf %97, %100 : vector<10x32xf32>
    %102 = arith.addf %99, %101 : vector<10x32xf32>
    %103 = math.tanh %102 : vector<10x32xf32>
    %cst_17 = arith.constant 1.000000e+00 : f32
    %104 = vector.broadcast %cst_17 : f32 to vector<10x32xf32>
    %105 = arith.subf %104, %98 : vector<10x32xf32>
    %106 = arith.mulf %105, %103 : vector<10x32xf32>
    %107 = arith.mulf %98, %84 : vector<10x32xf32>
    %108 = arith.addf %106, %107 : vector<10x32xf32>
    %109 = vector.extract_strided_slice %11 {offsets = [40, 0], sizes = [10, 128], strides = [1, 1]} : vector<50x128xf32> to vector<10x128xf32>
    %cst_18 = arith.constant dense<0.000000e+00> : vector<10x128xf32>
    %110 = tpu.matmul %108, %1, %cst_18 {dimension_numbers = #tpu.dot_dimension_numbers<[1], [0], [0], [1], [0, 0, 1, 1], [], []>} : vector<10x32xf32>, vector<32x128xf32>, vector<10x128xf32> -> vector<10x128xf32>
    %111 = vector.broadcast %4 : vector<1x128xf32> to vector<10x128xf32>
    %112 = arith.addf %110, %111 : vector<10x128xf32>
    %113 = vector.extract_strided_slice %109 {offsets = [0, 0], sizes = [10, 64], strides = [1, 1]} : vector<10x128xf32> to vector<10x64xf32>
    %114 = vector.extract_strided_slice %112 {offsets = [0, 0], sizes = [10, 64], strides = [1, 1]} : vector<10x128xf32> to vector<10x64xf32>
    %115 = arith.addf %113, %114 : vector<10x64xf32>
    %116 = arith.negf %115 : vector<10x64xf32>
    %117 = math.exp %116 : vector<10x64xf32>
    %cst_19 = arith.constant 1.000000e+00 : f32
    %118 = vector.broadcast %cst_19 : f32 to vector<10x64xf32>
    %119 = arith.addf %118, %117 : vector<10x64xf32>
    %120 = arith.divf %118, %119 : vector<10x64xf32>
    %121 = vector.extract_strided_slice %120 {offsets = [0, 0], sizes = [10, 32], strides = [1, 1]} : vector<10x64xf32> to vector<10x32xf32>
    %122 = vector.extract_strided_slice %120 {offsets = [0, 32], sizes = [10, 32], strides = [1, 1]} : vector<10x64xf32> to vector<10x32xf32>
    %123 = vector.extract_strided_slice %109 {offsets = [0, 64], sizes = [10, 32], strides = [1, 1]} : vector<10x128xf32> to vector<10x32xf32>
    %124 = vector.extract_strided_slice %112 {offsets = [0, 64], sizes = [10, 32], strides = [1, 1]} : vector<10x128xf32> to vector<10x32xf32>
    %125 = arith.mulf %121, %124 : vector<10x32xf32>
    %126 = arith.addf %123, %125 : vector<10x32xf32>
    %127 = math.tanh %126 : vector<10x32xf32>
    %cst_20 = arith.constant 1.000000e+00 : f32
    %128 = vector.broadcast %cst_20 : f32 to vector<10x32xf32>
    %129 = arith.subf %128, %122 : vector<10x32xf32>
    %130 = arith.mulf %129, %127 : vector<10x32xf32>
    %131 = arith.mulf %122, %108 : vector<10x32xf32>
    %132 = arith.addf %130, %131 : vector<10x32xf32>
    %c56 = arith.constant 56 : index
    %c0_21 = arith.constant 0 : index
    %133 = vector.load %arg2[%c56, %c0_21] : memref<232x128xf32, #tpu.memory_space<vmem>>, vector<32x128xf32>
    %cst_22 = arith.constant dense<0.000000e+00> : vector<10x128xf32>
    %134 = tpu.matmul %132, %133, %cst_22 {dimension_numbers = #tpu.dot_dimension_numbers<[1], [0], [0], [1], [0, 0, 1, 1], [], []>} : vector<10x32xf32>, vector<32x128xf32>, vector<10x128xf32> -> vector<10x128xf32>
    %c0_23 = arith.constant 0 : index
    %c0_24 = arith.constant 0 : index
    %135 = vector.load %arg1[%c0_23, %c0_24] : memref<10x10xf32, #tpu.memory_space<vmem>>, vector<10x10xf32>
    %cst_25 = arith.constant dense<0.000000e+00> : vector<10x128xf32>
    %136 = tpu.matmul %135, %134, %cst_25 {dimension_numbers = #tpu.dot_dimension_numbers<[1], [0], [0], [1], [0, 0, 1, 1], [], []>} : vector<10x10xf32>, vector<10x128xf32>, vector<10x128xf32> -> vector<10x128xf32>
    %137 = vector.broadcast %5 : vector<1x128xf32> to vector<10x128xf32>
    %138 = arith.addf %136, %137 : vector<10x128xf32>
    %c88 = arith.constant 88 : index
    %c0_26 = arith.constant 0 : index
    %139 = vector.load %arg2[%c88, %c0_26] : memref<232x128xf32, #tpu.memory_space<vmem>>, vector<128x128xf32>
    %cst_27 = arith.constant dense<0.000000e+00> : vector<10x128xf32>
    %140 = tpu.matmul %138, %139, %cst_27 {dimension_numbers = #tpu.dot_dimension_numbers<[1], [0], [0], [1], [0, 0, 1, 1], [], []>} : vector<10x128xf32>, vector<128x128xf32>, vector<10x128xf32> -> vector<10x128xf32>
    %141 = vector.broadcast %6 : vector<1x128xf32> to vector<10x128xf32>
    %142 = arith.addf %140, %141 : vector<10x128xf32>
    %143 = vector.extract_strided_slice %142 {offsets = [0, 0], sizes = [10, 16], strides = [1, 1]} : vector<10x128xf32> to vector<10x16xf32>
    %cst_28 = arith.constant 0.000000e+00 : f32
    %144 = vector.broadcast %cst_28 : f32 to vector<10x16xf32>
    %145 = arith.maximumf %143, %144 : vector<10x16xf32>
    %146 = vector.extract_strided_slice %142 {offsets = [0, 16], sizes = [10, 4], strides = [1, 1]} : vector<10x128xf32> to vector<10x4xf32>
    %c216 = arith.constant 216 : index
    %c0_29 = arith.constant 0 : index
    %147 = vector.load %arg2[%c216, %c0_29] : memref<232x128xf32, #tpu.memory_space<vmem>>, vector<16x128xf32>
    %cst_30 = arith.constant dense<0.000000e+00> : vector<10x128xf32>
    %148 = tpu.matmul %145, %147, %cst_30 {dimension_numbers = #tpu.dot_dimension_numbers<[1], [0], [0], [1], [0, 0, 1, 1], [], []>} : vector<10x16xf32>, vector<16x128xf32>, vector<10x128xf32> -> vector<10x128xf32>
    %149 = vector.broadcast %7 : vector<1x128xf32> to vector<10x128xf32>
    %150 = arith.addf %148, %149 : vector<10x128xf32>
    %151 = vector.extract_strided_slice %150 {offsets = [0, 0], sizes = [10, 1], strides = [1, 1]} : vector<10x128xf32> to vector<10x1xf32>
    %cst_31 = arith.constant 0.000000e+00 : f32
    %152 = vector.broadcast %cst_31 : f32 to vector<10x3xf32>
    %153 = tpu.concatenate %151, %146, %152 in 1 : vector<10x1xf32>, vector<10x4xf32>, vector<10x3xf32> -> vector<10x8xf32>
    %c0_32 = arith.constant 0 : index
    %c0_33 = arith.constant 0 : index
    %154 = vector.load %arg3[%c0_32, %c0_33] : memref<10x8xf32, #tpu.memory_space<vmem>>, vector<10x8xf32>
    tpu.vector_store %arg3[%c0_32, %c0_33], %153 {strides = array<i32>} : memref<10x8xf32, #tpu.memory_space<vmem>>, vector<10x8xf32>,
    return
  }
}

</mosaic_0001>

<llo_original>
// kernel: user_profiling_forward.1
$region0: #{user_profiling_forward.1}
  #allocation0 [shape = 'u32[]', space=smem, size = 0x4, offset = 0x4, fixed_abs, tag = 'smem constant byte address 0x4 - core index']
  #allocation1 [shape = 'u32[144,128]{1,0:T(1,128)}', space=vmem, size = 0x12000, scoped, tag = 'internal scratch']
  %s0 = inlined_call_operand.vmem [shape: f32[50,10], index: 0, kind: input, shape index: {}]
  %s1 = inlined_call_operand.vmem [shape: f32[10,10], index: 1, kind: input, shape index: {}]
  %s2 = inlined_call_operand.hbm [shape: f32[232,128], index: 2, kind: input, shape index: {}]
  %s3 = inlined_call_operand.vmem [shape: f32[10,8], index: 3, kind: output, shape index: {}]
  %s4 = sld [smem:[#allocation0]]
  $region26: #{user_profiling_forward.1} parent=0
    _
  %s6 = ssub.s32 1, %s4
  %s7 = scalar_select 0, %s6, %s4
  $region1: #{user_profiling_forward.1} parent=0
    #allocation2 [shape = 'u8[118784]{0}', space=vmem, size = 0x1d000, scoped, tag = 'input window, operand 2, single buffered']
    #allocation3 [shape = 's32[1]{0}', space=sflag, size = 0x4, scoped, tag = 'scoped memory for user_profiling_forward.1']
    %8 = vsyncpa [#allocation3], 0
    // Predicated region
    $region2: #{user_profiling_forward.1} parent=1 // pred_check
      _
    $region3: #{user_profiling_forward.1} parent=1 // pred_check_branch
      %10 = sbr.rel (0) target = $region5
    $region4: #{user_profiling_forward.1} parent=1 // pred_region
      _
    $region5: #{user_profiling_forward.1} parent=1 // pred_fallthru
      _
    // Predicated region
    $region6: #{user_profiling_forward.1} parent=1 // pred_check
      _
    $region7: #{user_profiling_forward.1} parent=1 // pred_check_branch
      %12 = sbr.rel (0) target = $region9
    $region8: #{user_profiling_forward.1} parent=1 // pred_region
      _
    $region9: #{user_profiling_forward.1} parent=1 // pred_fallthru
      _
    // Predicated region
    $region10: #{user_profiling_forward.1} parent=1 // pred_check
      _
    $region11: #{user_profiling_forward.1} parent=1 // pred_check_branch
      %14 = sbr.rel (0) target = $region13
    $region12: #{user_profiling_forward.1} parent=1 // pred_region
      %s16 = ssub.s32 3712, 3712
      %17 = vsyncadd [#allocation3], %s16
      %s18 = sshll.u32 [#allocation2], 4
      %s19 = int_to_ptr.vmem [resolvable:$true] %s18
      %24 = dma.hbm_to_vmem [thread:$0]  %s2, 3712, %s19, [#allocation3], 128, 128, 8
    $region13: #{user_profiling_forward.1} parent=1 // pred_fallthru
      _
    // Predicated region
    $region14: #{user_profiling_forward.1} parent=1 // pred_check
      _
    $region15: #{user_profiling_forward.1} parent=1 // pred_check_branch
      %26 = sbr.rel (0) target = $region17
    $region16: #{user_profiling_forward.1} parent=1 // pred_region
      %27 = dma.done [#allocation3], 3712
    $region17: #{user_profiling_forward.1} parent=1 // pred_fallthru
      _
    %v28 = vld [vmem:[#allocation2] sm:$0xff]
    %v29 = vld [vmem:[#allocation2 + $0x8] sm:$0x3]
    %v30 = vld [vmem:[#allocation2 + $0x10] sm:$0xff]
    %v31 = vld [vmem:[#allocation2 + $0x18] sm:$0xff]
    %v32 = vld [vmem:[#allocation2 + $0x20] sm:$0xff]
    %v33 = vld [vmem:[#allocation2 + $0x28] sm:$0xff]
    %v34 = vld [vmem:[#allocation2 + $0x30] sm:$0xff]
    %v35 = vld [vmem:[%s0] sm:$0xff]
    %v36 = vld [vmem:[%s0 + $0x8] sm:$0xff]
    %v37 = vld [vmem:[%s0 + $0x10] sm:$0xff]
    %v38 = vld [vmem:[%s0 + $0x18] sm:$0xff]
    %v39 = vld [vmem:[%s0 + $0x20] sm:$0xff]
    %v40 = vld [vmem:[%s0 + $0x28] sm:$0xff]
    %v41 = vld [vmem:[%s0 + $0x30] sm:$0x3]
    %v42 = vlaneseq
    %v43 = vshrl.u32 %v42, 7
    %v44 = vsub.s32 0, %v43
    %v45 = vrot.slane %v34, %v44
    %vm46 = vcmask 80896
    %v48 = vsel %vm46, %v35, 0
    %v51 = vsel %vm46, %v36, 0
    %v54 = vsel %vm46, %v37, 0
    %v57 = vsel %vm46, %v38, 0
    %v60 = vsel %vm46, %v39, 0
    %v63 = vsel %vm46, %v40, 0
    %v66 = vsel %vm46, %v41, 0
    %vm68 = vcmask 1041408
    %v70 = vsel %vm68, %v29, 0
    %72 = vmatprep.subr.mxu0 0.0
    %73 = vmatpush1.msra.mxu0 %v28
    %74 = vmatprep.subr.mxu0 0.0
    %75 = vmatpush1.msra.mxu0 %v70
    %76 = vmatprep.subr.mxu0 0.0
    %77 = vmatpush1.msra.mxu0 0.0
    %78 = vmatprep.subr.mxu0 0.0
    %79 = vmatpush1.msra.mxu0 0.0
    %80 = vmatprep.subr.mxu0 0.0
    %81 = vmatpush1.msra.mxu0 0.0
    %82 = vmatprep.subr.mxu0 0.0
    %83 = vmatpush1.msra.mxu0 0.0
    %84 = vmatprep.subr.mxu0 0.0
    %85 = vmatpush1.msra.mxu0 0.0
    %86 = vmatprep.subr.mxu0 0.0
    %87 = vmatpush1.msra.mxu0 0.0
    %88 = vmatprep.subr.mxu0 0.0
    %89 = vmatpush1.msra.mxu0 0.0
    %90 = vmatprep.subr.mxu0 0.0
    %91 = vmatpush1.msra.mxu0 0.0
    %92 = vmatprep.subr.mxu0 0.0
    %93 = vmatpush1.msra.mxu0 0.0
    %94 = vmatprep.subr.mxu0 0.0
    %95 = vmatpush1.msra.mxu0 0.0
    %96 = vmatprep.subr.mxu0 0.0
    %97 = vmatpush1.msra.mxu0 0.0
    %98 = vmatprep.subr.mxu0 0.0
    %99 = vmatpush1.msra.mxu0 0.0
    %100 = vmatprep.subr.mxu0 0.0
    %101 = vmatpush1.msra.mxu0 0.0
    %102 = vmatprep.subr.mxu0 0.0
    %103 = vmatpush1.msra.mxu0 0.0
    %104 = vmatprep.subr.mxu0 0.0
    %105 = vmatpush1.msra.mxu0 0.0
    %106 = vmatprep.subr.mxu0 0.0
    %107 = vmatpush1.msra.mxu0 0.0
    %108 = vmatprep.subr.mxu0 0.0
    %109 = vmatpush1.msra.mxu0 0.0
    %110 = vmatprep.subr.mxu0 0.0
    %111 = vmatpush1.msra.mxu0 0.0
    %112 = vmatprep.subr.mxu0 0.0
    %113 = vmatpush1.msra.mxu0 0.0
    %114 = vmatprep.subr.mxu0 0.0
    %115 = vmatpush1.msra.mxu0 0.0
    %116 = vmatprep.subr.mxu0 0.0
    %117 = vmatpush1.msra.mxu0 0.0
    %118 = vmatprep.subr.mxu0 0.0
    %119 = vmatpush1.msra.mxu0 0.0
    %120 = vmatprep.subr.mxu0 0.0
    %121 = vmatpush1.msra.mxu0 0.0
    %122 = vmatprep.subr.mxu0 0.0
    %123 = vmatpush1.msra.mxu0 0.0
    %124 = vmatprep.subr.mxu0 0.0
    %125 = vmatpush1.msra.mxu0 0.0
    %126 = vmatprep.subr.mxu0 0.0
    %127 = vmatpush1.msra.mxu0 0.0
    %128 = vmatprep.subr.mxu0 0.0
    %129 = vmatpush1.msra.mxu0 0.0
    %130 = vmatprep.subr.mxu0 0.0
    %131 = vmatpush1.msra.mxu0 0.0
    %132 = vmatprep.subr.mxu0 0.0
    %133 = vmatpush1.msra.mxu0 0.0
    %134 = vmatprep.subr.mxu0 0.0
    %135 = vmatpush1.msra.mxu0 0.0
    %136 = vmatprep.mubr.f32.mxu0 0.0
    %137 = vmatmul.mubr.f32.gmra.mrb[0].mxu0 %v48
    %v138 = vpop.f32.mrb[0].mxu0
    %v139 = vadd.f32 %v45, %v138
    %v140 = vpop.f32.mrb[0].mxu0
    %141 = vmatprep.mubr.f32.mxu0 0.0
    %142 = vmatmul.mubr.f32.gmra.mrb[0].mxu0 %v51
    %v143 = vpop.f32.mrb[0].mxu0
    %v144 = vadd.f32 %v45, %v143
    %v145 = vpop.f32.mrb[0].mxu0
    %146 = vmatprep.mubr.f32.mxu0 0.0
    %147 = vmatmul.mubr.f32.gmra.mrb[0].mxu0 %v54
    %v148 = vpop.f32.mrb[0].mxu0
    %v149 = vadd.f32 %v45, %v148
    %v150 = vpop.f32.mrb[0].mxu0
    %151 = vmatprep.mubr.f32.mxu0 0.0
    %152 = vmatmul.mubr.f32.gmra.mrb[0].mxu0 %v57
    %v153 = vpop.f32.mrb[0].mxu0
    %v154 = vadd.f32 %v45, %v153
    %v155 = vpop.f32.mrb[0].mxu0
    %156 = vmatprep.mubr.f32.mxu0 0.0
    %157 = vmatmul.mubr.f32.gmra.mrb[0].mxu0 %v60
    %v158 = vpop.f32.mrb[0].mxu0
    %v159 = vadd.f32 %v45, %v158
    %v160 = vpop.f32.mrb[0].mxu0
    %161 = vmatprep.mubr.f32.mxu0 0.0
    %162 = vmatmul.mubr.f32.gmra.mrb[0].mxu0 %v63
    %v163 = vpop.f32.mrb[0].mxu0
    %v164 = vadd.f32 %v45, %v163
    %v165 = vpop.f32.mrb[0].mxu0
    %166 = vmatprep.mubr.f32.mxu0 0.0
    %167 = vmatmul.mubr.f32.gmra.mrb[0].mxu0 %v66
    %v168 = vpop.f32.mrb[0].mxu0
    %v169 = vadd.f32 %v45, %v168
    %v170 = vpop.f32.mrb[0].mxu0
    %171 = vdwg.mxu0
    %v172 = vlaneseq
    %v173 = vshrl.u32 %v172, 7
    %v174 = vsub.s32 1, %v173
    %v175 = vrot.slane %v34, %v174
    %vm176 = vcmask 261120
    %v178 = vsel %vm176, 0.0, 0
    %180 = vmatprep.subr.mxu0 0.0
    %181 = vmatpush1.msra.mxu0 %v30
    %182 = vmatprep.subr.mxu0 0.0
    %183 = vmatpush1.msra.mxu0 %v31
    %184 = vmatprep.subr.mxu0 0.0
    %185 = vmatpush1.msra.mxu0 %v32
    %186 = vmatprep.subr.mxu0 0.0
    %187 = vmatpush1.msra.mxu0 %v33
    %188 = vmatprep.subr.mxu0 0.0
    %189 = vmatpush1.msra.mxu0 0.0
    %190 = vmatprep.subr.mxu0 0.0
    %191 = vmatpush1.msra.mxu0 0.0
    %192 = vmatprep.subr.mxu0 0.0
    %193 = vmatpush1.msra.mxu0 0.0
    %194 = vmatprep.subr.mxu0 0.0
    %195 = vmatpush1.msra.mxu0 0.0
    %196 = vmatprep.subr.mxu0 0.0
    %197 = vmatpush1.msra.mxu0 0.0
    %198 = vmatprep.subr.mxu0 0.0
    %199 = vmatpush1.msra.mxu0 0.0
    %200 = vmatprep.subr.mxu0 0.0
    %201 = vmatpush1.msra.mxu0 0.0
    %202 = vmatprep.subr.mxu0 0.0
    %203 = vmatpush1.msra.mxu0 0.0
    %204 = vmatprep.subr.mxu0 0.0
    %205 = vmatpush1.msra.mxu0 0.0
    %206 = vmatprep.subr.mxu0 0.0
    %207 = vmatpush1.msra.mxu0 0.0
    %208 = vmatprep.subr.mxu0 0.0
    %209 = vmatpush1.msra.mxu0 0.0
    %210 = vmatprep.subr.mxu0 0.0
    %211 = vmatpush1.msra.mxu0 0.0
    %212 = vmatprep.subr.mxu0 0.0
    %213 = vmatpush1.msra.mxu0 0.0
    %214 = vmatprep.subr.mxu0 0.0
    %215 = vmatpush1.msra.mxu0 0.0
    %216 = vmatprep.subr.mxu0 0.0
    %217 = vmatpush1.msra.mxu0 0.0
    %218 = vmatprep.subr.mxu0 0.0
    %219 = vmatpush1.msra.mxu0 0.0
    %220 = vmatprep.subr.mxu0 0.0
    %221 = vmatpush1.msra.mxu0 0.0
    %222 = vmatprep.subr.mxu0 0.0
    %223 = vmatpush1.msra.mxu0 0.0
    %224 = vmatprep.subr.mxu0 0.0
    %225 = vmatpush1.msra.mxu0 0.0
    %226 = vmatprep.subr.mxu0 0.0
    %227 = vmatpush1.msra.mxu0 0.0
    %228 = vmatprep.subr.mxu0 0.0
    %229 = vmatpush1.msra.mxu0 0.0
    %230 = vmatprep.subr.mxu0 0.0
    %231 = vmatpush1.msra.mxu0 0.0
    %232 = vmatprep.subr.mxu0 0.0
    %233 = vmatpush1.msra.mxu0 0.0
    %234 = vmatprep.subr.mxu0 0.0
    %235 = vmatpush1.msra.mxu0 0.0
    %236 = vmatprep.subr.mxu0 0.0
    %237 = vmatpush1.msra.mxu0 0.0
    %238 = vmatprep.subr.mxu0 0.0
    %239 = vmatpush1.msra.mxu0 0.0
    %240 = vmatprep.subr.mxu0 0.0
    %241 = vmatpush1.msra.mxu0 0.0
    %242 = vmatprep.subr.mxu0 0.0
    %243 = vmatpush1.msra.mxu0 0.0
    %244 = vmatprep.mubr.f32.mxu0 0.0
    %245 = vmatmul.mubr.f32.gmra.mrb[0].mxu0 %v178
    %v246 = vpop.f32.mrb[0].mxu0
    %v247 = vadd.f32 %v175, %v246
    %v248 = vpop.f32.mrb[0].mxu0
    %249 = vmatprep.mubr.f32.mxu0 0.0
    %250 = vmatmul.mubr.f32.gmra.mrb[0].mxu0 %v178
    %v251 = vpop.f32.mrb[0].mxu0
    %v252 = vadd.f32 %v175, %v251
    %v253 = vpop.f32.mrb[0].mxu0
    %254 = vdwg.mxu0
    %v255 = vadd.f32 %v139, %v247
    %v256 = vadd.f32 %v144, %v252
    %v257 = vxor.u32 %v255, 2147483648
    %v258 = vxor.u32 %v256, 2147483648
    %v259 = vmul.f32 %v257, 1.442695
    %v260 = vpow.pop %v259
    %v261 = vmul.f32 %v258, 1.442695
    %v262 = vpow.pop %v261
    %v263 = vadd.f32 %v260, 1.0
    %v264 = vadd.f32 %v262, 1.0
    %v265 = vrcp.pop %v263
    %v266 = vmul.f32 1.0, %v265
    %v267 = vrcp.pop %v264
    %v268 = vmul.f32 1.0, %v267
    %271 = vrot.lane.b32.xlu0 %v247, 64
    %v272 = vpop.permute.xlu0 %271
    %273 = vrot.lane.b32.xlu0 %v252, 64
    %v274 = vpop.permute.xlu0 %273
    %v277 = vmul.f32 %v266, %v272
    %v278 = vmul.f32 %v268, %v274
    %281 = vrot.lane.b32.xlu0 %v277, 64
    %v282 = vpop.permute.xlu0 %281
    %283 = vrot.lane.b32.xlu0 %v278, 64
    %v284 = vpop.permute.xlu0 %283
    %v287 = vadd.f32 %v139, %v282
    %v288 = vadd.f32 %v144, %v284
    %v289 = vtanh.pop %v287
    %v290 = vtanh.pop %v288
    %v291 = vsub.f32 1.0, %v266
    %v292 = vsub.f32 1.0, %v268
    %295 = vrot.lane.b32.xlu0 %v289, 96
    %v296 = vpop.permute.xlu0 %295
    %297 = vrot.lane.b32.xlu0 %v290, 96
    %v298 = vpop.permute.xlu0 %297
    %v301 = vmul.f32 %v291, %v296
    %v302 = vmul.f32 %v292, %v298
    %v303 = vmul.f32 %v266, 0.0
    %v304 = vmul.f32 %v268, 0.0
    %v305 = vadd.f32 %v301, %v303
    %v306 = vadd.f32 %v302, %v304
    %309 = vrot.lane.b32.xlu0 %v305, 96
    %v310 = vpop.permute.xlu0 %309
    %311 = vrot.lane.b32.xlu0 %v306, 96
    %v312 = vpop.permute.xlu0 %311
    %v313 = vsel %vm176, %v310, 0
    %v315 = vsel %vm176, %v312, 0
    %317 = vmatprep.subr.mxu0 0.0
    %318 = vmatpush1.msra.mxu0 %v30
    %319 = vmatprep.subr.mxu0 0.0
    %320 = vmatpush1.msra.mxu0 %v31
    %321 = vmatprep.subr.mxu0 0.0
    %322 = vmatpush1.msra.mxu0 %v32
    %323 = vmatprep.subr.mxu0 0.0
    %324 = vmatpush1.msra.mxu0 %v33
    %325 = vmatprep.subr.mxu0 0.0
    %326 = vmatpush1.msra.mxu0 0.0
    %327 = vmatprep.subr.mxu0 0.0
    %328 = vmatpush1.msra.mxu0 0.0
    %329 = vmatprep.subr.mxu0 0.0
    %330 = vmatpush1.msra.mxu0 0.0
    %331 = vmatprep.subr.mxu0 0.0
    %332 = vmatpush1.msra.mxu0 0.0
    %333 = vmatprep.subr.mxu0 0.0
    %334 = vmatpush1.msra.mxu0 0.0
    %335 = vmatprep.subr.mxu0 0.0
    %336 = vmatpush1.msra.mxu0 0.0
    %337 = vmatprep.subr.mxu0 0.0
    %338 = vmatpush1.msra.mxu0 0.0
    %339 = vmatprep.subr.mxu0 0.0
    %340 = vmatpush1.msra.mxu0 0.0
    %341 = vmatprep.subr.mxu0 0.0
    %342 = vmatpush1.msra.mxu0 0.0
    %343 = vmatprep.subr.mxu0 0.0
    %344 = vmatpush1.msra.mxu0 0.0
    %345 = vmatprep.subr.mxu0 0.0
    %346 = vmatpush1.msra.mxu0 0.0
    %347 = vmatprep.subr.mxu0 0.0
    %348 = vmatpush1.msra.mxu0 0.0
    %349 = vmatprep.subr.mxu0 0.0
    %350 = vmatpush1.msra.mxu0 0.0
    %351 = vmatprep.subr.mxu0 0.0
    %352 = vmatpush1.msra.mxu0 0.0
    %353 = vmatprep.subr.mxu0 0.0
    %354 = vmatpush1.msra.mxu0 0.0
    %355 = vmatprep.subr.mxu0 0.0
    %356 = vmatpush1.msra.mxu0 0.0
    %357 = vmatprep.subr.mxu0 0.0
    %358 = vmatpush1.msra.mxu0 0.0
    %359 = vmatprep.subr.mxu0 0.0
    %360 = vmatpush1.msra.mxu0 0.0
    %361 = vmatprep.subr.mxu0 0.0
    %362 = vmatpush1.msra.mxu0 0.0
    %363 = vmatprep.subr.mxu0 0.0
    %364 = vmatpush1.msra.mxu0 0.0
    %365 = vmatprep.subr.mxu0 0.0
    %366 = vmatpush1.msra.mxu0 0.0
    %367 = vmatprep.subr.mxu0 0.0
    %368 = vmatpush1.msra.mxu0 0.0
    %369 = vmatprep.subr.mxu0 0.0
    %370 = vmatpush1.msra.mxu0 0.0
    %371 = vmatprep.subr.mxu0 0.0
    %372 = vmatpush1.msra.mxu0 0.0
    %373 = vmatprep.subr.mxu0 0.0
    %374 = vmatpush1.msra.mxu0 0.0
    %375 = vmatprep.subr.mxu0 0.0
    %376 = vmatpush1.msra.mxu0 0.0
    %377 = vmatprep.subr.mxu0 0.0
    %378 = vmatpush1.msra.mxu0 0.0
    %379 = vmatprep.subr.mxu0 0.0
    %380 = vmatpush1.msra.mxu0 0.0
    %381 = vmatprep.mubr.f32.mxu0 0.0
    %382 = vmatmul.mubr.f32.gmra.mrb[0].mxu0 %v313
    %v383 = vpop.f32.mrb[0].mxu0
    %v384 = vadd.f32 %v175, %v383
    %v385 = vpop.f32.mrb[0].mxu0
    %386 = vmatprep.mubr.f32.mxu0 0.0
    %387 = vmatmul.mubr.f32.gmra.mrb[0].mxu0 %v315
    %v388 = vpop.f32.mrb[0].mxu0
    %v389 = vadd.f32 %v175, %v388
    %v390 = vpop.f32.mrb[0].mxu0
    %391 = vdwg.mxu0
    %v394 = vrot.slane %v384, 6
    %v395 = vrot.slane %v389, 6
    %v396 = vsel %vm68, %v394, %v395
    %v399 = vadd.f32 %v144, %v394
    %v400 = vadd.f32 %v149, %v396
    %v401 = vxor.u32 %v399, 2147483648
    %v402 = vxor.u32 %v400, 2147483648
    %v403 = vmul.f32 %v401, 1.442695
    %v404 = vpow.pop %v403
    %v405 = vmul.f32 %v402, 1.442695
    %v406 = vpow.pop %v405
    %v407 = vadd.f32 %v404, 1.0
    %v408 = vadd.f32 %v406, 1.0
    %v409 = vrcp.pop %v407
    %v410 = vmul.f32 1.0, %v409
    %v411 = vrcp.pop %v408
    %v412 = vmul.f32 1.0, %v411
    %413 = vrot.lane.b32.xlu0 %v394, 64
    %v414 = vpop.permute.xlu0 %413
    %415 = vrot.lane.b32.xlu0 %v396, 64
    %v416 = vpop.permute.xlu0 %415
    %v419 = vmul.f32 %v410, %v414
    %v420 = vmul.f32 %v412, %v416
    %423 = vrot.lane.b32.xlu0 %v419, 64
    %v424 = vpop.permute.xlu0 %423
    %425 = vrot.lane.b32.xlu0 %v420, 64
    %v426 = vpop.permute.xlu0 %425
    %v429 = vadd.f32 %v144, %v424
    %v430 = vadd.f32 %v149, %v426
    %v431 = vtanh.pop %v429
    %v432 = vtanh.pop %v430
    %v433 = vsub.f32 1.0, %v410
    %v434 = vsub.f32 1.0, %v412
    %437 = vrot.lane.b32.xlu0 %v431, 96
    %v438 = vpop.permute.xlu0 %437
    %439 = vrot.lane.b32.xlu0 %v432, 96
    %v440 = vpop.permute.xlu0 %439
    %v443 = vmul.f32 %v433, %v438
    %v444 = vmul.f32 %v434, %v440
    %v445 = vrot.slane %v305, 6
    %v446 = vrot.slane %v306, 6
    %v447 = vsel %vm68, %v445, %v446
    %v450 = vmul.f32 %v410, %v445
    %v451 = vmul.f32 %v412, %v447
    %v452 = vadd.f32 %v443, %v450
    %v453 = vadd.f32 %v444, %v451
    %vm456 = vcmask 1045504
    %v457 = vrot.slane %v452, 2
    %v458 = vrot.slane %v453, 2
    %v459 = vsel %vm456, %v457, %v458
    %460 = vrot.lane.b32.xlu0 %v459, 96
    %v461 = vpop.permute.xlu0 %460
    %462 = vrot.lane.b32.xlu0 %v458, 96
    %v463 = vpop.permute.xlu0 %462
    %v464 = vsel %vm176, %v461, 0
    %v466 = vsel %vm176, %v463, 0
    %468 = vmatprep.subr.mxu0 0.0
    %469 = vmatpush1.msra.mxu0 %v30
    %470 = vmatprep.subr.mxu0 0.0
    %471 = vmatpush1.msra.mxu0 %v31
    %472 = vmatprep.subr.mxu0 0.0
    %473 = vmatpush1.msra.mxu0 %v32
    %474 = vmatprep.subr.mxu0 0.0
    %475 = vmatpush1.msra.mxu0 %v33
    %476 = vmatprep.subr.mxu0 0.0
    %477 = vmatpush1.msra.mxu0 0.0
    %478 = vmatprep.subr.mxu0 0.0
    %479 = vmatpush1.msra.mxu0 0.0
    %480 = vmatprep.subr.mxu0 0.0
    %481 = vmatpush1.msra.mxu0 0.0
    %482 = vmatprep.subr.mxu0 0.0
    %483 = vmatpush1.msra.mxu0 0.0
    %484 = vmatprep.subr.mxu0 0.0
    %485 = vmatpush1.msra.mxu0 0.0
    %486 = vmatprep.subr.mxu0 0.0
    %487 = vmatpush1.msra.mxu0 0.0
    %488 = vmatprep.subr.mxu0 0.0
    %489 = vmatpush1.msra.mxu0 0.0
    %490 = vmatprep.subr.mxu0 0.0
    %491 = vmatpush1.msra.mxu0 0.0
    %492 = vmatprep.subr.mxu0 0.0
    %493 = vmatpush1.msra.mxu0 0.0
    %494 = vmatprep.subr.mxu0 0.0
    %495 = vmatpush1.msra.mxu0 0.0
    %496 = vmatprep.subr.mxu0 0.0
    %497 = vmatpush1.msra.mxu0 0.0
    %498 = vmatprep.subr.mxu0 0.0
    %499 = vmatpush1.msra.mxu0 0.0
    %500 = vmatprep.subr.mxu0 0.0
    %501 = vmatpush1.msra.mxu0 0.0
    %502 = vmatprep.subr.mxu0 0.0
    %503 = vmatpush1.msra.mxu0 0.0
    %504 = vmatprep.subr.mxu0 0.0
    %505 = vmatpush1.msra.mxu0 0.0
    %506 = vmatprep.subr.mxu0 0.0
    %507 = vmatpush1.msra.mxu0 0.0
    %508 = vmatprep.subr.mxu0 0.0
    %509 = vmatpush1.msra.mxu0 0.0
    %510 = vmatprep.subr.mxu0 0.0
    %511 = vmatpush1.msra.mxu0 0.0
    %512 = vmatprep.subr.mxu0 0.0
    %513 = vmatpush1.msra.mxu0 0.0
    %514 = vmatprep.subr.mxu0 0.0
    %515 = vmatpush1.msra.mxu0 0.0
    %516 = vmatprep.subr.mxu0 0.0
    %517 = vmatpush1.msra.mxu0 0.0
    %518 = vmatprep.subr.mxu0 0.0
    %519 = vmatpush1.msra.mxu0 0.0
    %520 = vmatprep.subr.mxu0 0.0
    %521 = vmatpush1.msra.mxu0 0.0
    %522 = vmatprep.subr.mxu0 0.0
    %523 = vmatpush1.msra.mxu0 0.0
    %524 = vmatprep.subr.mxu0 0.0
    %525 = vmatpush1.msra.mxu0 0.0
    %526 = vmatprep.subr.mxu0 0.0
    %527 = vmatpush1.msra.mxu0 0.0
    %528 = vmatprep.subr.mxu0 0.0
    %529 = vmatpush1.msra.mxu0 0.0
    %530 = vmatprep.subr.mxu0 0.0
    %531 = vmatpush1.msra.mxu0 0.0
    %532 = vmatprep.mubr.f32.mxu0 0.0
    %533 = vmatmul.mubr.f32.gmra.mrb[0].mxu0 %v464
    %v534 = vpop.f32.mrb[0].mxu0
    %v535 = vadd.f32 %v175, %v534
    %v536 = vpop.f32.mrb[0].mxu0
    %537 = vmatprep.mubr.f32.mxu0 0.0
    %538 = vmatmul.mubr.f32.gmra.mrb[0].mxu0 %v466
    %v539 = vpop.f32.mrb[0].mxu0
    %v540 = vadd.f32 %v175, %v539
    %v541 = vpop.f32.mrb[0].mxu0
    %542 = vdwg.mxu0
    %vm545 = vcmask 1043456
    %v546 = vrot.slane %v535, 4
    %v547 = vrot.slane %v540, 4
    %v548 = vsel %vm545, %v546, %v547
    %v551 = vadd.f32 %v149, %v546
    %v552 = vadd.f32 %v154, %v548
    %v553 = vxor.u32 %v551, 2147483648
    %v554 = vxor.u32 %v552, 2147483648
    %v555 = vmul.f32 %v553, 1.442695
    %v556 = vpow.pop %v555
    %v557 = vmul.f32 %v554, 1.442695
    %v558 = vpow.pop %v557
    %v559 = vadd.f32 %v556, 1.0
    %v560 = vadd.f32 %v558, 1.0
    %v561 = vrcp.pop %v559
    %v562 = vmul.f32 1.0, %v561
    %v563 = vrcp.pop %v560
    %v564 = vmul.f32 1.0, %v563
    %565 = vrot.lane.b32.xlu0 %v546, 64
    %v566 = vpop.permute.xlu0 %565
    %567 = vrot.lane.b32.xlu0 %v548, 64
    %v568 = vpop.permute.xlu0 %567
    %v571 = vmul.f32 %v562, %v566
    %v572 = vmul.f32 %v564, %v568
    %575 = vrot.lane.b32.xlu0 %v571, 64
    %v576 = vpop.permute.xlu0 %575
    %577 = vrot.lane.b32.xlu0 %v572, 64
    %v578 = vpop.permute.xlu0 %577
    %v581 = vadd.f32 %v149, %v576
    %v582 = vadd.f32 %v154, %v578
    %v583 = vtanh.pop %v581
    %v584 = vtanh.pop %v582
    %v585 = vsub.f32 1.0, %v562
    %v586 = vsub.f32 1.0, %v564
    %589 = vrot.lane.b32.xlu0 %v583, 96
    %v590 = vpop.permute.xlu0 %589
    %591 = vrot.lane.b32.xlu0 %v584, 96
    %v592 = vpop.permute.xlu0 %591
    %v595 = vmul.f32 %v585, %v590
    %v596 = vmul.f32 %v586, %v592
    %v597 = vrot.slane %v452, 6
    %v598 = vrot.slane %v453, 6
    %v599 = vsel %vm68, %v597, %v598
    %v602 = vmul.f32 %v562, %v597
    %v603 = vmul.f32 %v564, %v599
    %v604 = vadd.f32 %v595, %v602
    %v605 = vadd.f32 %v596, %v603
    %v608 = vrot.slane %v604, 4
    %v609 = vrot.slane %v605, 4
    %v610 = vsel %vm545, %v608, %v609
    %611 = vrot.lane.b32.xlu0 %v610, 96
    %v612 = vpop.permute.xlu0 %611
    %613 = vrot.lane.b32.xlu0 %v609, 96
    %v614 = vpop.permute.xlu0 %613
    %v615 = vsel %vm176, %v612, 0
    %v617 = vsel %vm176, %v614, 0
    %619 = vmatprep.subr.mxu0 0.0
    %620 = vmatpush1.msra.mxu0 %v30
    %621 = vmatprep.subr.mxu0 0.0
    %622 = vmatpush1.msra.mxu0 %v31
    %623 = vmatprep.subr.mxu0 0.0
    %624 = vmatpush1.msra.mxu0 %v32
    %625 = vmatprep.subr.mxu0 0.0
    %626 = vmatpush1.msra.mxu0 %v33
    %627 = vmatprep.subr.mxu0 0.0
    %628 = vmatpush1.msra.mxu0 0.0
    %629 = vmatprep.subr.mxu0 0.0
    %630 = vmatpush1.msra.mxu0 0.0
    %631 = vmatprep.subr.mxu0 0.0
    %632 = vmatpush1.msra.mxu0 0.0
    %633 = vmatprep.subr.mxu0 0.0
    %634 = vmatpush1.msra.mxu0 0.0
    %635 = vmatprep.subr.mxu0 0.0
    %636 = vmatpush1.msra.mxu0 0.0
    %637 = vmatprep.subr.mxu0 0.0
    %638 = vmatpush1.msra.mxu0 0.0
    %639 = vmatprep.subr.mxu0 0.0
    %640 = vmatpush1.msra.mxu0 0.0
    %641 = vmatprep.subr.mxu0 0.0
    %642 = vmatpush1.msra.mxu0 0.0
    %643 = vmatprep.subr.mxu0 0.0
    %644 = vmatpush1.msra.mxu0 0.0
    %645 = vmatprep.subr.mxu0 0.0
    %646 = vmatpush1.msra.mxu0 0.0
    %647 = vmatprep.subr.mxu0 0.0
    %648 = vmatpush1.msra.mxu0 0.0
    %649 = vmatprep.subr.mxu0 0.0
    %650 = vmatpush1.msra.mxu0 0.0
    %651 = vmatprep.subr.mxu0 0.0
    %652 = vmatpush1.msra.mxu0 0.0
    %653 = vmatprep.subr.mxu0 0.0
    %654 = vmatpush1.msra.mxu0 0.0
    %655 = vmatprep.subr.mxu0 0.0
    %656 = vmatpush1.msra.mxu0 0.0
    %657 = vmatprep.subr.mxu0 0.0
    %658 = vmatpush1.msra.mxu0 0.0
    %659 = vmatprep.subr.mxu0 0.0
    %660 = vmatpush1.msra.mxu0 0.0
    %661 = vmatprep.subr.mxu0 0.0
    %662 = vmatpush1.msra.mxu0 0.0
    %663 = vmatprep.subr.mxu0 0.0
    %664 = vmatpush1.msra.mxu0 0.0
    %665 = vmatprep.subr.mxu0 0.0
    %666 = vmatpush1.msra.mxu0 0.0
    %667 = vmatprep.subr.mxu0 0.0
    %668 = vmatpush1.msra.mxu0 0.0
    %669 = vmatprep.subr.mxu0 0.0
    %670 = vmatpush1.msra.mxu0 0.0
    %671 = vmatprep.subr.mxu0 0.0
    %672 = vmatpush1.msra.mxu0 0.0
    %673 = vmatprep.subr.mxu0 0.0
    %674 = vmatpush1.msra.mxu0 0.0
    %675 = vmatprep.subr.mxu0 0.0
    %676 = vmatpush1.msra.mxu0 0.0
    %677 = vmatprep.subr.mxu0 0.0
    %678 = vmatpush1.msra.mxu0 0.0
    %679 = vmatprep.subr.mxu0 0.0
    %680 = vmatpush1.msra.mxu0 0.0
    %681 = vmatprep.subr.mxu0 0.0
    %682 = vmatpush1.msra.mxu0 0.0
    %683 = vmatprep.mubr.f32.mxu0 0.0
    %684 = vmatmul.mubr.f32.gmra.mrb[0].mxu0 %v615
    %v685 = vpop.f32.mrb[0].mxu0
    %v686 = vadd.f32 %v175, %v685
    %v687 = vpop.f32.mrb[0].mxu0
    %688 = vmatprep.mubr.f32.mxu0 0.0
    %689 = vmatmul.mubr.f32.gmra.mrb[0].mxu0 %v617
    %v690 = vpop.f32.mrb[0].mxu0
    %v691 = vadd.f32 %v175, %v690
    %v692 = vpop.f32.mrb[0].mxu0
    %693 = vdwg.mxu0
    %v696 = vrot.slane %v686, 2
    %v697 = vrot.slane %v691, 2
    %v698 = vsel %vm456, %v696, %v697
    %v701 = vadd.f32 %v154, %v696
    %v702 = vadd.f32 %v159, %v698
    %v703 = vxor.u32 %v701, 2147483648
    %v704 = vxor.u32 %v702, 2147483648
    %v705 = vmul.f32 %v703, 1.442695
    %v706 = vpow.pop %v705
    %v707 = vmul.f32 %v704, 1.442695
    %v708 = vpow.pop %v707
    %v709 = vadd.f32 %v706, 1.0
    %v710 = vadd.f32 %v708, 1.0
    %v711 = vrcp.pop %v709
    %v712 = vmul.f32 1.0, %v711
    %v713 = vrcp.pop %v710
    %v714 = vmul.f32 1.0, %v713
    %715 = vrot.lane.b32.xlu0 %v696, 64
    %v716 = vpop.permute.xlu0 %715
    %717 = vrot.lane.b32.xlu0 %v698, 64
    %v718 = vpop.permute.xlu0 %717
    %v721 = vmul.f32 %v712, %v716
    %v722 = vmul.f32 %v714, %v718
    %725 = vrot.lane.b32.xlu0 %v721, 64
    %v726 = vpop.permute.xlu0 %725
    %727 = vrot.lane.b32.xlu0 %v722, 64
    %v728 = vpop.permute.xlu0 %727
    %v731 = vadd.f32 %v154, %v726
    %v732 = vadd.f32 %v159, %v728
    %v733 = vtanh.pop %v731
    %v734 = vtanh.pop %v732
    %v735 = vsub.f32 1.0, %v712
    %v736 = vsub.f32 1.0, %v714
    %739 = vrot.lane.b32.xlu0 %v733, 96
    %v740 = vpop.permute.xlu0 %739
    %741 = vrot.lane.b32.xlu0 %v734, 96
    %v742 = vpop.permute.xlu0 %741
    %v745 = vmul.f32 %v735, %v740
    %v746 = vmul.f32 %v736, %v742
    %v747 = vrot.slane %v604, 6
    %v748 = vrot.slane %v605, 6
    %v749 = vsel %vm68, %v747, %v748
    %v752 = vmul.f32 %v712, %v747
    %v753 = vmul.f32 %v714, %v749
    %v754 = vadd.f32 %v745, %v752
    %v755 = vadd.f32 %v746, %v753
    %v758 = vrot.slane %v754, 6
    %v759 = vrot.slane %v755, 6
    %v760 = vsel %vm68, %v758, %v759
    %761 = vrot.lane.b32.xlu0 %v760, 96
    %v762 = vpop.permute.xlu0 %761
    %763 = vrot.lane.b32.xlu0 %v759, 96
    %v764 = vpop.permute.xlu0 %763
    %v765 = vsel %vm176, %v762, 0
    %v767 = vsel %vm176, %v764, 0
    %769 = vmatprep.subr.mxu0 0.0
    %770 = vmatpush1.msra.mxu0 %v30
    %771 = vmatprep.subr.mxu0 0.0
    %772 = vmatpush1.msra.mxu0 %v31
    %773 = vmatprep.subr.mxu0 0.0
    %774 = vmatpush1.msra.mxu0 %v32
    %775 = vmatprep.subr.mxu0 0.0
    %776 = vmatpush1.msra.mxu0 %v33
    %777 = vmatprep.subr.mxu0 0.0
    %778 = vmatpush1.msra.mxu0 0.0
    %779 = vmatprep.subr.mxu0 0.0
    %780 = vmatpush1.msra.mxu0 0.0
    %781 = vmatprep.subr.mxu0 0.0
    %782 = vmatpush1.msra.mxu0 0.0
    %783 = vmatprep.subr.mxu0 0.0
    %784 = vmatpush1.msra.mxu0 0.0
    %785 = vmatprep.subr.mxu0 0.0
    %786 = vmatpush1.msra.mxu0 0.0
    %787 = vmatprep.subr.mxu0 0.0
    %788 = vmatpush1.msra.mxu0 0.0
    %789 = vmatprep.subr.mxu0 0.0
    %790 = vmatpush1.msra.mxu0 0.0
    %791 = vmatprep.subr.mxu0 0.0
    %792 = vmatpush1.msra.mxu0 0.0
    %793 = vmatprep.subr.mxu0 0.0
    %794 = vmatpush1.msra.mxu0 0.0
    %795 = vmatprep.subr.mxu0 0.0
    %796 = vmatpush1.msra.mxu0 0.0
    %797 = vmatprep.subr.mxu0 0.0
    %798 = vmatpush1.msra.mxu0 0.0
    %799 = vmatprep.subr.mxu0 0.0
    %800 = vmatpush1.msra.mxu0 0.0
    %801 = vmatprep.subr.mxu0 0.0
    %802 = vmatpush1.msra.mxu0 0.0
    %803 = vmatprep.subr.mxu0 0.0
    %804 = vmatpush1.msra.mxu0 0.0
    %805 = vmatprep.subr.mxu0 0.0
    %806 = vmatpush1.msra.mxu0 0.0
    %807 = vmatprep.subr.mxu0 0.0
    %808 = vmatpush1.msra.mxu0 0.0
    %809 = vmatprep.subr.mxu0 0.0
    %810 = vmatpush1.msra.mxu0 0.0
    %811 = vmatprep.subr.mxu0 0.0
    %812 = vmatpush1.msra.mxu0 0.0
    %813 = vmatprep.subr.mxu0 0.0
    %814 = vmatpush1.msra.mxu0 0.0
    %815 = vmatprep.subr.mxu0 0.0
    %816 = vmatpush1.msra.mxu0 0.0
    %817 = vmatprep.subr.mxu0 0.0
    %818 = vmatpush1.msra.mxu0 0.0
    %819 = vmatprep.subr.mxu0 0.0
    %820 = vmatpush1.msra.mxu0 0.0
    %821 = vmatprep.subr.mxu0 0.0
    %822 = vmatpush1.msra.mxu0 0.0
    %823 = vmatprep.subr.mxu0 0.0
    %824 = vmatpush1.msra.mxu0 0.0
    %825 = vmatprep.subr.mxu0 0.0
    %826 = vmatpush1.msra.mxu0 0.0
    %827 = vmatprep.subr.mxu0 0.0
    %828 = vmatpush1.msra.mxu0 0.0
    %829 = vmatprep.subr.mxu0 0.0
    %830 = vmatpush1.msra.mxu0 0.0
    %831 = vmatprep.subr.mxu0 0.0
    %832 = vmatpush1.msra.mxu0 0.0
    %833 = vmatprep.mubr.f32.mxu0 0.0
    %834 = vmatmul.mubr.f32.gmra.mrb[0].mxu0 %v765
    %v835 = vpop.f32.mrb[0].mxu0
    %v836 = vadd.f32 %v175, %v835
    %v837 = vpop.f32.mrb[0].mxu0
    %838 = vmatprep.mubr.f32.mxu0 0.0
    %839 = vmatmul.mubr.f32.gmra.mrb[0].mxu0 %v767
    %v840 = vpop.f32.mrb[0].mxu0
    %v841 = vadd.f32 %v175, %v840
    %v842 = vpop.f32.mrb[0].mxu0
    %843 = vdwg.mxu0
    %v844 = vadd.f32 %v164, %v836
    %v845 = vadd.f32 %v169, %v841
    %v846 = vxor.u32 %v844, 2147483648
    %v847 = vxor.u32 %v845, 2147483648
    %v848 = vmul.f32 %v846, 1.442695
    %v849 = vpow.pop %v848
    %v850 = vmul.f32 %v847, 1.442695
    %v851 = vpow.pop %v850
    %v852 = vadd.f32 %v849, 1.0
    %v853 = vadd.f32 %v851, 1.0
    %v854 = vrcp.pop %v852
    %v855 = vmul.f32 1.0, %v854
    %v856 = vrcp.pop %v853
    %v857 = vmul.f32 1.0, %v856
    %860 = vrot.lane.b32.xlu0 %v836, 64
    %v861 = vpop.permute.xlu0 %860
    %862 = vrot.lane.b32.xlu0 %v841, 64
    %v863 = vpop.permute.xlu0 %862
    %v866 = vmul.f32 %v855, %v861
    %v867 = vmul.f32 %v857, %v863
    %870 = vrot.lane.b32.xlu0 %v866, 64
    %v871 = vpop.permute.xlu0 %870
    %872 = vrot.lane.b32.xlu0 %v867, 64
    %v873 = vpop.permute.xlu0 %872
    %v876 = vadd.f32 %v164, %v871
    %v877 = vadd.f32 %v169, %v873
    %v878 = vtanh.pop %v876
    %v879 = vtanh.pop %v877
    %v880 = vsub.f32 1.0, %v855
    %v881 = vsub.f32 1.0, %v857
    %884 = vrot.lane.b32.xlu0 %v878, 96
    %v885 = vpop.permute.xlu0 %884
    %886 = vrot.lane.b32.xlu0 %v879, 96
    %v887 = vpop.permute.xlu0 %886
    %v890 = vmul.f32 %v880, %v885
    %v891 = vmul.f32 %v881, %v887
    %v894 = vmul.f32 %v855, %v760
    %v895 = vmul.f32 %v857, %v759
    %v896 = vadd.f32 %v890, %v894
    %v897 = vadd.f32 %v891, %v895
    %v898 = vld [vmem:[#allocation2 + $0x38] sm:$0xff]
    %v899 = vld [vmem:[#allocation2 + $0x40] sm:$0xff]
    %v900 = vld [vmem:[#allocation2 + $0x48] sm:$0xff]
    %v901 = vld [vmem:[#allocation2 + $0x50] sm:$0xff]
    %904 = vrot.lane.b32.xlu0 %v896, 96
    %v905 = vpop.permute.xlu0 %904
    %906 = vrot.lane.b32.xlu0 %v897, 96
    %v907 = vpop.permute.xlu0 %906
    %v908 = vsel %vm176, %v905, 0
    %v910 = vsel %vm176, %v907, 0
    %912 = vmatprep.subr.mxu0 0.0
    %913 = vmatpush1.msra.mxu0 %v898
    %914 = vmatprep.subr.mxu0 0.0
    %915 = vmatpush1.msra.mxu0 %v899
    %916 = vmatprep.subr.mxu0 0.0
    %917 = vmatpush1.msra.mxu0 %v900
    %918 = vmatprep.subr.mxu0 0.0
    %919 = vmatpush1.msra.mxu0 %v901
    %920 = vmatprep.subr.mxu0 0.0
    %921 = vmatpush1.msra.mxu0 0.0
    %922 = vmatprep.subr.mxu0 0.0
    %923 = vmatpush1.msra.mxu0 0.0
    %924 = vmatprep.subr.mxu0 0.0
    %925 = vmatpush1.msra.mxu0 0.0
    %926 = vmatprep.subr.mxu0 0.0
    %927 = vmatpush1.msra.mxu0 0.0
    %928 = vmatprep.subr.mxu0 0.0
    %929 = vmatpush1.msra.mxu0 0.0
    %930 = vmatprep.subr.mxu0 0.0
    %931 = vmatpush1.msra.mxu0 0.0
    %932 = vmatprep.subr.mxu0 0.0
    %933 = vmatpush1.msra.mxu0 0.0
    %934 = vmatprep.subr.mxu0 0.0
    %935 = vmatpush1.msra.mxu0 0.0
    %936 = vmatprep.subr.mxu0 0.0
    %937 = vmatpush1.msra.mxu0 0.0
    %938 = vmatprep.subr.mxu0 0.0
    %939 = vmatpush1.msra.mxu0 0.0
    %940 = vmatprep.subr.mxu0 0.0
    %941 = vmatpush1.msra.mxu0 0.0
    %942 = vmatprep.subr.mxu0 0.0
    %943 = vmatpush1.msra.mxu0 0.0
    %944 = vmatprep.subr.mxu0 0.0
    %945 = vmatpush1.msra.mxu0 0.0
    %946 = vmatprep.subr.mxu0 0.0
    %947 = vmatpush1.msra.mxu0 0.0
    %948 = vmatprep.subr.mxu0 0.0
    %949 = vmatpush1.msra.mxu0 0.0
    %950 = vmatprep.subr.mxu0 0.0
    %951 = vmatpush1.msra.mxu0 0.0
    %952 = vmatprep.subr.mxu0 0.0
    %953 = vmatpush1.msra.mxu0 0.0
    %954 = vmatprep.subr.mxu0 0.0
    %955 = vmatpush1.msra.mxu0 0.0
    %956 = vmatprep.subr.mxu0 0.0
    %957 = vmatpush1.msra.mxu0 0.0
    %958 = vmatprep.subr.mxu0 0.0
    %959 = vmatpush1.msra.mxu0 0.0
    %960 = vmatprep.subr.mxu0 0.0
    %961 = vmatpush1.msra.mxu0 0.0
    %962 = vmatprep.subr.mxu0 0.0
    %963 = vmatpush1.msra.mxu0 0.0
    %964 = vmatprep.subr.mxu0 0.0
    %965 = vmatpush1.msra.mxu0 0.0
    %966 = vmatprep.subr.mxu0 0.0
    %967 = vmatpush1.msra.mxu0 0.0
    %968 = vmatprep.subr.mxu0 0.0
    %969 = vmatpush1.msra.mxu0 0.0
    %970 = vmatprep.subr.mxu0 0.0
    %971 = vmatpush1.msra.mxu0 0.0
    %972 = vmatprep.subr.mxu0 0.0
    %973 = vmatpush1.msra.mxu0 0.0
    %974 = vmatprep.subr.mxu0 0.0
    %975 = vmatpush1.msra.mxu0 0.0
    %976 = vmatprep.mubr.f32.mxu0 0.0
    %977 = vmatmul.mubr.f32.gmra.mrb[0].mxu0 %v908
    %v978 = vpop.f32.mrb[0].mxu0
    %v979 = vadd.f32 0.0, %v978
    %v980 = vpop.f32.mrb[0].mxu0
    %981 = vmatprep.mubr.f32.mxu0 0.0
    %982 = vmatmul.mubr.f32.gmra.mrb[0].mxu0 %v910
    %v983 = vpop.f32.mrb[0].mxu0
    %v984 = vadd.f32 0.0, %v983
    %v985 = vpop.f32.mrb[0].mxu0
    %986 = vdwg.mxu0
    %v987 = vld [vmem:[%s1] sm:$0xff]
    %v988 = vld [vmem:[%s1 + $0x8] sm:$0x3]
    %v989 = vlaneseq
    %v990 = vshrl.u32 %v989, 7
    %v991 = vsub.s32 2, %v990
    %v992 = vrot.slane %v34, %v991
    %v994 = vsel %vm46, %v987, 0
    %v997 = vsel %vm46, %v988, 0
    %v1000 = vsel %vm68, %v984, 0
    %1002 = vmatprep.subr.mxu0 0.0
    %1003 = vmatpush1.msra.mxu0 %v979
    %1004 = vmatprep.subr.mxu0 0.0
    %1005 = vmatpush1.msra.mxu0 %v1000
    %1006 = vmatprep.subr.mxu0 0.0
    %1007 = vmatpush1.msra.mxu0 0.0
    %1008 = vmatprep.subr.mxu0 0.0
    %1009 = vmatpush1.msra.mxu0 0.0
    %1010 = vmatprep.subr.mxu0 0.0
    %1011 = vmatpush1.msra.mxu0 0.0
    %1012 = vmatprep.subr.mxu0 0.0
    %1013 = vmatpush1.msra.mxu0 0.0
    %1014 = vmatprep.subr.mxu0 0.0
    %1015 = vmatpush1.msra.mxu0 0.0
    %1016 = vmatprep.subr.mxu0 0.0
    %1017 = vmatpush1.msra.mxu0 0.0
    %1018 = vmatprep.subr.mxu0 0.0
    %1019 = vmatpush1.msra.mxu0 0.0
    %1020 = vmatprep.subr.mxu0 0.0
    %1021 = vmatpush1.msra.mxu0 0.0
    %1022 = vmatprep.subr.mxu0 0.0
    %1023 = vmatpush1.msra.mxu0 0.0
    %1024 = vmatprep.subr.mxu0 0.0
    %1025 = vmatpush1.msra.mxu0 0.0
    %1026 = vmatprep.subr.mxu0 0.0
    %1027 = vmatpush1.msra.mxu0 0.0
    %1028 = vmatprep.subr.mxu0 0.0
    %1029 = vmatpush1.msra.mxu0 0.0
    %1030 = vmatprep.subr.mxu0 0.0
    %1031 = vmatpush1.msra.mxu0 0.0
    %1032 = vmatprep.subr.mxu0 0.0
    %1033 = vmatpush1.msra.mxu0 0.0
    %1034 = vmatprep.subr.mxu0 0.0
    %1035 = vmatpush1.msra.mxu0 0.0
    %1036 = vmatprep.subr.mxu0 0.0
    %1037 = vmatpush1.msra.mxu0 0.0
    %1038 = vmatprep.subr.mxu0 0.0
    %1039 = vmatpush1.msra.mxu0 0.0
    %1040 = vmatprep.subr.mxu0 0.0
    %1041 = vmatpush1.msra.mxu0 0.0
    %1042 = vmatprep.subr.mxu0 0.0
    %1043 = vmatpush1.msra.mxu0 0.0
    %1044 = vmatprep.subr.mxu0 0.0
    %1045 = vmatpush1.msra.mxu0 0.0
    %1046 = vmatprep.subr.mxu0 0.0
    %1047 = vmatpush1.msra.mxu0 0.0
    %1048 = vmatprep.subr.mxu0 0.0
    %1049 = vmatpush1.msra.mxu0 0.0
    %1050 = vmatprep.subr.mxu0 0.0
    %1051 = vmatpush1.msra.mxu0 0.0
    %1052 = vmatprep.subr.mxu0 0.0
    %1053 = vmatpush1.msra.mxu0 0.0
    %1054 = vmatprep.subr.mxu0 0.0
    %1055 = vmatpush1.msra.mxu0 0.0
    %1056 = vmatprep.subr.mxu0 0.0
    %1057 = vmatpush1.msra.mxu0 0.0
    %1058 = vmatprep.subr.mxu0 0.0
    %1059 = vmatpush1.msra.mxu0 0.0
    %1060 = vmatprep.subr.mxu0 0.0
    %1061 = vmatpush1.msra.mxu0 0.0
    %1062 = vmatprep.subr.mxu0 0.0
    %1063 = vmatpush1.msra.mxu0 0.0
    %1064 = vmatprep.subr.mxu0 0.0
    %1065 = vmatpush1.msra.mxu0 0.0
    %1066 = vmatprep.mubr.f32.mxu0 0.0
    %1067 = vmatmul.mubr.f32.gmra.mrb[0].mxu0 %v994
    %v1068 = vpop.f32.mrb[0].mxu0
    %v1069 = vadd.f32 %v992, %v1068
    %v1070 = vpop.f32.mrb[0].mxu0
    %1071 = vmatprep.mubr.f32.mxu0 0.0
    %1072 = vmatmul.mubr.f32.gmra.mrb[0].mxu0 %v997
    %v1073 = vpop.f32.mrb[0].mxu0
    %v1074 = vadd.f32 %v992, %v1073
    %v1075 = vpop.f32.mrb[0].mxu0
    %1076 = vdwg.mxu0
    %v1077 = vld [vmem:[#allocation2 + $0x58] sm:$0xff]
    %v1078 = vld [vmem:[#allocation2 + $0x60] sm:$0xff]
    %v1079 = vld [vmem:[#allocation2 + $0x68] sm:$0xff]
    %v1080 = vld [vmem:[#allocation2 + $0x70] sm:$0xff]
    %v1081 = vld [vmem:[#allocation2 + $0x78] sm:$0xff]
    %v1082 = vld [vmem:[#allocation2 + $0x80] sm:$0xff]
    %v1083 = vld [vmem:[#allocation2 + $0x88] sm:$0xff]
    %v1084 = vld [vmem:[#allocation2 + $0x90] sm:$0xff]
    %v1085 = vld [vmem:[#allocation2 + $0x98] sm:$0xff]
    %v1086 = vld [vmem:[#allocation2 + $0xa0] sm:$0xff]
    %v1087 = vld [vmem:[#allocation2 + $0xa8] sm:$0xff]
    %v1088 = vld [vmem:[#allocation2 + $0xb0] sm:$0xff]
    %v1089 = vld [vmem:[#allocation2 + $0xb8] sm:$0xff]
    %v1090 = vld [vmem:[#allocation2 + $0xc0] sm:$0xff]
    %v1091 = vld [vmem:[#allocation2 + $0xc8] sm:$0xff]
    %v1092 = vld [vmem:[#allocation2 + $0xd0] sm:$0xff]
    %v1093 = vlaneseq
    %v1094 = vshrl.u32 %v1093, 7
    %v1095 = vsub.s32 3, %v1094
    %v1096 = vrot.slane %v34, %v1095
    %1097 = vmatprep.subr.mxu0 0.0
    %1098 = vmatpush1.msra.mxu0 %v1077
    %1099 = vmatprep.subr.mxu0 0.0
    %1100 = vmatpush1.msra.mxu0 %v1078
    %1101 = vmatprep.subr.mxu0 0.0
    %1102 = vmatpush1.msra.mxu0 %v1079
    %1103 = vmatprep.subr.mxu0 0.0
    %1104 = vmatpush1.msra.mxu0 %v1080
    %1105 = vmatprep.subr.mxu0 0.0
    %1106 = vmatpush1.msra.mxu0 %v1081
    %1107 = vmatprep.subr.mxu0 0.0
    %1108 = vmatpush1.msra.mxu0 %v1082
    %1109 = vmatprep.subr.mxu0 0.0
    %1110 = vmatpush1.msra.mxu0 %v1083
    %1111 = vmatprep.subr.mxu0 0.0
    %1112 = vmatpush1.msra.mxu0 %v1084
    %1113 = vmatprep.subr.mxu0 0.0
    %1114 = vmatpush1.msra.mxu0 %v1085
    %1115 = vmatprep.subr.mxu0 0.0
    %1116 = vmatpush1.msra.mxu0 %v1086
    %1117 = vmatprep.subr.mxu0 0.0
    %1118 = vmatpush1.msra.mxu0 %v1087
    %1119 = vmatprep.subr.mxu0 0.0
    %1120 = vmatpush1.msra.mxu0 %v1088
    %1121 = vmatprep.subr.mxu0 0.0
    %1122 = vmatpush1.msra.mxu0 %v1089
    %1123 = vmatprep.subr.mxu0 0.0
    %1124 = vmatpush1.msra.mxu0 %v1090
    %1125 = vmatprep.subr.mxu0 0.0
    %1126 = vmatpush1.msra.mxu0 %v1091
    %1127 = vmatprep.subr.mxu0 0.0
    %1128 = vmatpush1.msra.mxu0 %v1092
    %1129 = vmatprep.subr.mxu0 0.0
    %1130 = vmatpush1.msra.mxu0 0.0
    %1131 = vmatprep.subr.mxu0 0.0
    %1132 = vmatpush1.msra.mxu0 0.0
    %1133 = vmatprep.subr.mxu0 0.0
    %1134 = vmatpush1.msra.mxu0 0.0
    %1135 = vmatprep.subr.mxu0 0.0
    %1136 = vmatpush1.msra.mxu0 0.0
    %1137 = vmatprep.subr.mxu0 0.0
    %1138 = vmatpush1.msra.mxu0 0.0
    %1139 = vmatprep.subr.mxu0 0.0
    %1140 = vmatpush1.msra.mxu0 0.0
    %1141 = vmatprep.subr.mxu0 0.0
    %1142 = vmatpush1.msra.mxu0 0.0
    %1143 = vmatprep.subr.mxu0 0.0
    %1144 = vmatpush1.msra.mxu0 0.0
    %1145 = vmatprep.subr.mxu0 0.0
    %1146 = vmatpush1.msra.mxu0 0.0
    %1147 = vmatprep.subr.mxu0 0.0
    %1148 = vmatpush1.msra.mxu0 0.0
    %1149 = vmatprep.subr.mxu0 0.0
    %1150 = vmatpush1.msra.mxu0 0.0
    %1151 = vmatprep.subr.mxu0 0.0
    %1152 = vmatpush1.msra.mxu0 0.0
    %1153 = vmatprep.subr.mxu0 0.0
    %1154 = vmatpush1.msra.mxu0 0.0
    %1155 = vmatprep.subr.mxu0 0.0
    %1156 = vmatpush1.msra.mxu0 0.0
    %1157 = vmatprep.subr.mxu0 0.0
    %1158 = vmatpush1.msra.mxu0 0.0
    %1159 = vmatprep.subr.mxu0 0.0
    %1160 = vmatpush1.msra.mxu0 0.0
    %1161 = vmatprep.mubr.f32.mxu0 0.0
    %1162 = vmatmul.mubr.f32.gmra.mrb[0].mxu0 %v1069
    %v1163 = vpop.f32.mrb[0].mxu0
    %v1164 = vadd.f32 %v1096, %v1163
    %v1165 = vpop.f32.mrb[0].mxu0
    %1166 = vmatprep.mubr.f32.mxu0 0.0
    %1167 = vmatmul.mubr.f32.gmra.mrb[0].mxu0 %v1074
    %v1168 = vpop.f32.mrb[0].mxu0
    %v1169 = vadd.f32 %v1096, %v1168
    %v1170 = vpop.f32.mrb[0].mxu0
    %1171 = vdwg.mxu0
    %v1172 = vmax.f32 %v1164, 0.0
    %v1173 = vmax.f32 %v1169, 0.0
    %v1174 = vld [vmem:[#allocation2 + $0xd8] sm:$0xff]
    %v1175 = vld [vmem:[#allocation2 + $0xe0] sm:$0xff]
    %v1176 = vlaneseq
    %v1177 = vshrl.u32 %v1176, 7
    %v1178 = vsub.s32 4, %v1177
    %v1179 = vrot.slane %v34, %v1178
    %vm1180 = vcmask 130048
    %v1182 = vsel %vm1180, %v1172, 0
    %v1185 = vsel %vm1180, %v1173, 0
    %1187 = vmatprep.subr.mxu0 0.0
    %1188 = vmatpush1.msra.mxu0 %v1174
    %1189 = vmatprep.subr.mxu0 0.0
    %1190 = vmatpush1.msra.mxu0 %v1175
    %1191 = vmatprep.subr.mxu0 0.0
    %1192 = vmatpush1.msra.mxu0 0.0
    %1193 = vmatprep.subr.mxu0 0.0
    %1194 = vmatpush1.msra.mxu0 0.0
    %1195 = vmatprep.subr.mxu0 0.0
    %1196 = vmatpush1.msra.mxu0 0.0
    %1197 = vmatprep.subr.mxu0 0.0
    %1198 = vmatpush1.msra.mxu0 0.0
    %1199 = vmatprep.subr.mxu0 0.0
    %1200 = vmatpush1.msra.mxu0 0.0
    %1201 = vmatprep.subr.mxu0 0.0
    %1202 = vmatpush1.msra.mxu0 0.0
    %1203 = vmatprep.subr.mxu0 0.0
    %1204 = vmatpush1.msra.mxu0 0.0
    %1205 = vmatprep.subr.mxu0 0.0
    %1206 = vmatpush1.msra.mxu0 0.0
    %1207 = vmatprep.subr.mxu0 0.0
    %1208 = vmatpush1.msra.mxu0 0.0
    %1209 = vmatprep.subr.mxu0 0.0
    %1210 = vmatpush1.msra.mxu0 0.0
    %1211 = vmatprep.subr.mxu0 0.0
    %1212 = vmatpush1.msra.mxu0 0.0
    %1213 = vmatprep.subr.mxu0 0.0
    %1214 = vmatpush1.msra.mxu0 0.0
    %1215 = vmatprep.subr.mxu0 0.0
    %1216 = vmatpush1.msra.mxu0 0.0
    %1217 = vmatprep.subr.mxu0 0.0
    %1218 = vmatpush1.msra.mxu0 0.0
    %1219 = vmatprep.subr.mxu0 0.0
    %1220 = vmatpush1.msra.mxu0 0.0
    %1221 = vmatprep.subr.mxu0 0.0
    %1222 = vmatpush1.msra.mxu0 0.0
    %1223 = vmatprep.subr.mxu0 0.0
    %1224 = vmatpush1.msra.mxu0 0.0
    %1225 = vmatprep.subr.mxu0 0.0
    %1226 = vmatpush1.msra.mxu0 0.0
    %1227 = vmatprep.subr.mxu0 0.0
    %1228 = vmatpush1.msra.mxu0 0.0
    %1229 = vmatprep.subr.mxu0 0.0
    %1230 = vmatpush1.msra.mxu0 0.0
    %1231 = vmatprep.subr.mxu0 0.0
    %1232 = vmatpush1.msra.mxu0 0.0
    %1233 = vmatprep.subr.mxu0 0.0
    %1234 = vmatpush1.msra.mxu0 0.0
    %1235 = vmatprep.subr.mxu0 0.0
    %1236 = vmatpush1.msra.mxu0 0.0
    %1237 = vmatprep.subr.mxu0 0.0
    %1238 = vmatpush1.msra.mxu0 0.0
    %1239 = vmatprep.subr.mxu0 0.0
    %1240 = vmatpush1.msra.mxu0 0.0
    %1241 = vmatprep.subr.mxu0 0.0
    %1242 = vmatpush1.msra.mxu0 0.0
    %1243 = vmatprep.subr.mxu0 0.0
    %1244 = vmatpush1.msra.mxu0 0.0
    %1245 = vmatprep.subr.mxu0 0.0
    %1246 = vmatpush1.msra.mxu0 0.0
    %1247 = vmatprep.subr.mxu0 0.0
    %1248 = vmatpush1.msra.mxu0 0.0
    %1249 = vmatprep.subr.mxu0 0.0
    %1250 = vmatpush1.msra.mxu0 0.0
    %1251 = vmatprep.mubr.f32.mxu0 0.0
    %1252 = vmatmul.mubr.f32.gmra.mrb[0].mxu0 %v1182
    %v1253 = vpop.f32.mrb[0].mxu0
    %v1254 = vadd.f32 %v1179, %v1253
    %v1255 = vpop.f32.mrb[0].mxu0
    %1256 = vmatprep.mubr.f32.mxu0 0.0
    %1257 = vmatmul.mubr.f32.gmra.mrb[0].mxu0 %v1185
    %v1258 = vpop.f32.mrb[0].mxu0
    %v1259 = vadd.f32 %v1179, %v1258
    %v1260 = vpop.f32.mrb[0].mxu0
    %1261 = vdwg.mxu0
    %1264 = vrot.lane.b32.xlu0 %v1164, 113
    %v1265 = vpop.permute.xlu0 %1264
    %1266 = vrot.lane.b32.xlu0 %v1169, 113
    %v1267 = vpop.permute.xlu0 %1266
    %vm1270 = vcmask 7168
    %v1271 = vsel %vm1270, %v1254, %v1265
    %v1272 = vsel %vm1270, %v1259, %v1267
    %vm1273 = vcmask 39936
    %v1274 = vsel %vm1273, %v1271, 0.0
    %v1275 = vsel %vm1273, %v1272, 0.0
    %vm1276 = vcmask 64512
    %1277 = vst.msk [vmem:[%s3] sm:$0xff] %vm1276, %v1274
    %vm1278 = vcmask 58368
    %1279 = vst.msk [vmem:[%s3 + $0x8] sm:$0x3] %vm1278, %v1275
    // Predicated region
    $region18: #{user_profiling_forward.1} parent=1 // pred_check
      _
    $region19: #{user_profiling_forward.1} parent=1 // pred_check_branch
      %1281 = sbr.rel (0) target = $region21
    $region20: #{user_profiling_forward.1} parent=1 // pred_region
      _
    $region21: #{user_profiling_forward.1} parent=1 // pred_fallthru
      _
    // Predicated region
    $region22: #{user_profiling_forward.1} parent=1 // pred_check
      _
    $region23: #{user_profiling_forward.1} parent=1 // pred_check_branch
      %1283 = sbr.rel (0) target = $region25
    $region24: #{user_profiling_forward.1} parent=1 // pred_region
      _
    $region25: #{user_profiling_forward.1} parent=1 // pred_fallthru
      _
    %1284 = vsyncpa [#allocation3], 1

</llo_original>
